<compile_context>
chip_gen: v5e
topology: v5e:2x2
jax: 0.10.0
libtpu: 0.0.40
codegen_flags: <defaults>
</compile_context>

<pallas_src>
import numpy as np
import jax
import jax.numpy as jnp
from jax.experimental import pallas as pl
from jax.experimental.pallas import tpu as pltpu


# ----------------------------------------------------------------------------
# Fused encoder + decoder kernel (grid-less, everything resident in VMEM)
# ----------------------------------------------------------------------------
def fused_enc_dec_kernel(data_ref, w_ref, b_ref, out_ref):
    f32 = jnp.float32
    bf16 = jnp.bfloat16

    T = data_ref.shape[0] - 2          # observed timesteps
    A = data_ref.shape[1]              # agents
    Gd = w_ref.shape[1]                # 4 * Hp (padded decoder gate width)
    Hp = Gd // 4                       # padded decoder hidden
    E = w_ref.shape[0] - 3 * Hp        # encoder hidden (= agent_embed_dim)
    Ge = 4 * E                         # encoder gate width (one lane width)
    nf = out_ref.shape[1] // 2         # future steps

    # -------------------- encoder: masked LSTM over observed trajectory -----------------
    # Only the recurrent weight is needed here; x-projection (+bias) is precomputed.
    eWh = w_ref[0:E, 0:Ge]             # (E, 4E) bf16
    h = jnp.zeros((A, E), f32)
    c = jnp.zeros((A, E), f32)
    for t in range(T):                 # fully unrolled (static T)
        row = data_ref[t]              # (A, 4Hp) f32
        xz = row[:, 0:Ge]              # precomputed x @ W_x + b, all 4 gates packed
        m = row[:, Ge:Ge + 1]          # (A, 1) pack_padded_sequence mask {0,1}
        z = xz + jnp.dot(h.astype(bf16), eWh, preferred_element_type=f32)   # (A, 4E)
        sg = jax.nn.sigmoid(z)
        th = jnp.tanh(z)
        i_g = sg[:, 0:E]               # PyTorch gate order [i, f, g, o]
        f_g = sg[:, E:2 * E]
        g_g = th[:, 2 * E:3 * E]
        o_g = sg[:, 3 * E:4 * E]
        c_new = f_g * c + i_g * g_g
        h_new = o_g * jnp.tanh(c_new)
        h = h + m * (h_new - h)        # freeze state once t >= length
        c = c + m * (c_new - c)

    # -------------------- decoder: autoregressive rollout --------------------
    # Decoder weights are read only now (keeps peak vreg liveness low).
    dWh = w_ref[E:E + Hp, :]                     # (Hp, 4Hp) bf16, step 0 (unfused)
    dWh_f = w_ref[E + Hp:E + 2 * Hp, :]          # (Hp, 4Hp) bf16, steps 1.. (h2p folded)
    b_all = b_ref[...]                           # (2, 4Hp) f32
    db_f = b_all[0:1, :]                         # fused gate bias for steps 1..

    # decoder_h0 = concat(encoder hidden, zero noise, zero pad); c0 = 0
    hd = jnp.concatenate([h, jnp.zeros((A, Hp - E), f32)], axis=1)   # (A, Hp)
    cd = jnp.zeros((A, Hp), f32)
    x0 = data_ref[T]                             # (A, 4Hp) = vel @ W_x + b (precomputed)

    hds = []
    for t in range(nf):                          # fully unrolled (static nf)
        if t == 0:
            z = x0 + jnp.dot(hd.astype(bf16), dWh, preferred_element_type=f32)
        else:
            z = db_f + jnp.dot(hd.astype(bf16), dWh_f, preferred_element_type=f32)
        sg = jax.nn.sigmoid(z)
        th = jnp.tanh(z)
        i_g = sg[:, 0:Hp]
        f_g = sg[:, Hp:2 * Hp]
        g_g = th[:, 2 * Hp:3 * Hp]
        o_g = sg[:, 3 * Hp:4 * Hp]
        cd = f_g * cd + i_g * g_g
        hd = o_g * jnp.tanh(cd)
        hds.append(hd)

    # hidden_to_pos for all steps in ONE matmul, then prefix-sum of relative steps.
    wh2p = w_ref[E + 2 * Hp:E + 3 * Hp, :][:, 0:2]   # (Hp, 2) bf16 (padded rows are zero)
    bh2p = b_all[1:2, 0:2]                           # (1, 2) f32
    H_all = jnp.concatenate(hds, axis=0)             # (nf*A, Hp)
    rels = jnp.dot(H_all.astype(bf16), wh2p, preferred_element_type=f32) + bh2p  # (nf*A, 2)

    cum = data_ref[T + 1][:, 0:2]                    # decode_start_pos (A, 2)
    outs = []
    for t in range(nf):
        cum = cum + rels[t * A:(t + 1) * A, :]
        outs.append(cum)
    out_ref[...] = jnp.concatenate(outs, axis=1)     # single (A, 2*nf) store


# ----------------------------------------------------------------------------
# Parameters: PyTorch-layout synthetic init + algebraic fold / pack for the kernel
# ----------------------------------------------------------------------------
def init_params(key, agent_embed_dim=32, noise_dim=16):
    """Synthetic parameters in the original module's layout (Linear / LSTM shapes)."""
    E = agent_embed_dim
    Hd = agent_embed_dim + noise_dim
    ks = jax.random.split(key, 12)
    s = 0.1
    enc = dict(
        w_sp=jax.random.normal(ks[0], (2, E), jnp.float32) * s,        # Linear(2, E)
        b_sp=jax.random.normal(ks[1], (1, E), jnp.float32) * s,
        w_ih=jax.random.normal(ks[2], (E, 4 * E), jnp.float32) * s,    # LSTM(E, E), gates [i,f,g,o]
        w_hh=jax.random.normal(ks[3], (E, 4 * E), jnp.float32) * s,
        b=jax.random.normal(ks[4], (1, 4 * E), jnp.float32) * s,       # b_ih + b_hh combined
    )
    dec = dict(
        w_sp=jax.random.normal(ks[5], (2, Hd), jnp.float32) * s,       # Linear(2, Hd)
        b_sp=jax.random.normal(ks[6], (1, Hd), jnp.float32) * s,
        w_ih=jax.random.normal(ks[7], (Hd, 4 * Hd), jnp.float32) * s,  # LSTM(Hd, Hd)
        w_hh=jax.random.normal(ks[8], (Hd, 4 * Hd), jnp.float32) * s,
        b=jax.random.normal(ks[9], (1, 4 * Hd), jnp.float32) * s,
        w_h2p=jax.random.normal(ks[10], (Hd, 2), jnp.float32) * s,     # Linear(Hd, 2)
        b_h2p=jax.random.normal(ks[11], (1, 2), jnp.float32) * s,
    )
    return enc, dec


def _round_up(x, m):
    return ((x + m - 1) // m) * m


def prepare_kernel_params(params, agent_embed_dim=32, noise_dim=16):
    """Exact algebraic folds + lane-dense packing.

    Encoder: gates = x @ (w_sp@w_ih) + h @ w_hh + (b + b_sp@w_ih)
    Decoder: for t>=1 the input rel_{t-1} = h_{t-1}@w_h2p + b_h2p re-enters only via
             W_x := w_sp@w_ih, so the recurrence collapses to
             gates = h_{t-1} @ (w_hh + w_h2p@W_x) + (b + b_sp@w_ih + b_h2p@W_x).
    Decoder hidden is zero-padded Hd=48 -> Hp=64 (padding columns/rows are zero, so
    padded lanes stay exactly 0 throughout the rollout).
    """
    enc, dec = params
    E = agent_embed_dim
    Hd = agent_embed_dim + noise_dim
    Hp = _round_up(Hd, 32)          # 4*Hp multiple of 128 (lane-dense gate slabs)

    # ---- encoder: fold spatial embedding into the LSTM input path ----
    eWx = jnp.dot(enc["w_sp"], enc["w_ih"])               # (2, 4E)
    eb = enc["b"] + jnp.dot(enc["b_sp"], enc["w_ih"])     # (1, 4E)
    eWh = enc["w_hh"]                                     # (E, 4E)

    # ---- decoder: fold spatial embedding, then fold hidden_to_pos into recurrence ----
    dWx = jnp.dot(dec["w_sp"], dec["w_ih"])               # (2, 4Hd)
    db = dec["b"] + jnp.dot(dec["b_sp"], dec["w_ih"])     # (1, 4Hd)
    dWh = dec["w_hh"]                                     # (Hd, 4Hd)   step 0
    dWh_f = dWh + jnp.dot(dec["w_h2p"], dWx)              # (Hd, 4Hd)   steps 1..
    db_f = db + jnp.dot(dec["b_h2p"], dWx)                # (1, 4Hd)

    def pad_gates(m):  # (..., 4*Hd) -> (..., 4*Hp): zero-pad inside each gate block
        lead = m.shape[:-1]
        m4 = m.reshape(lead + (4, Hd))
        m4 = jnp.pad(m4, [(0, 0)] * len(lead) + [(0, 0), (0, Hp - Hd)])
        return m4.reshape(lead + (4 * Hp,))

    def pad_rows(m):   # (Hd, n) -> (Hp, n)
        return jnp.pad(m, [(0, Hp - Hd), (0, 0)])

    dWx_p = pad_gates(dWx)                                # (2, 4Hp)   wrapper-side
    db_p = pad_gates(db)                                  # (1, 4Hp)   wrapper-side
    dWh_p = pad_rows(pad_gates(dWh))                      # (Hp, 4Hp)
    dWh_f_p = pad_rows(pad_gates(dWh_f))                  # (Hp, 4Hp)
    db_f_p = pad_gates(db_f)                              # (1, 4Hp)
    wh2p_p = pad_rows(dec["w_h2p"])                       # (Hp, 2)

    G = 4 * Hp
    # One lane-dense bf16 weight slab, statically sliced in-kernel:
    #   rows [0, E)            lanes [0, 4E) : encoder w_hh
    #   rows [E, E+Hp)                        : decoder w_hh (step 0)
    #   rows [E+Hp, E+2Hp)                    : decoder fused w_hh (steps 1..)
    #   rows [E+2Hp, E+3Hp)    lanes [0, 2)   : hidden_to_pos weight
    w_slab = jnp.zeros((E + 3 * Hp, G), jnp.float32)
    w_slab = w_slab.at[0:E, 0:4 * E].set(eWh)
    w_slab = w_slab.at[E:E + Hp, :].set(dWh_p)
    w_slab = w_slab.at[E + Hp:E + 2 * Hp, :].set(dWh_f_p)
    w_slab = w_slab.at[E + 2 * Hp:E + 3 * Hp, 0:2].set(wh2p_p)
    w_slab = w_slab.astype(jnp.bfloat16)

    # Small f32 bias slab: row 0 = fused decoder gate bias, row 1 = hidden_to_pos bias.
    b_slab = jnp.zeros((2, G), jnp.float32)
    b_slab = b_slab.at[0, :].set(db_f_p[0])
    b_slab = b_slab.at[1, 0:2].set(dec["b_h2p"][0])

    return dict(E=E, Hp=Hp, eWx=eWx, eb=eb, dWx_p=dWx_p, db_p=db_p,
                w_slab=w_slab, b_slab=b_slab)


# ----------------------------------------------------------------------------
# Full forward (mirrors SimpleEncoderDecoder.forward)
# ----------------------------------------------------------------------------
def simple_encoder_decoder(kp, past_traj, past_lens, mask_idx,
                           decode_start_vel, decode_start_pos, nfuture):
    A, T, _ = past_traj.shape
    E, Hp = kp["E"], kp["Hp"]
    G = 4 * Hp
    assert 4 * E + 1 <= G

    # permute (A, T, 2) -> (T, A, 2) as in the PyTorch encoder(), then precompute the
    # encoder x-projection (spatial embedding + bias folded) off the serial chain.
    traj_tm = jnp.transpose(past_traj, (1, 0, 2)).astype(jnp.float32)            # (T, A, 2)
    encx = jnp.dot(traj_tm, kp["eWx"]) + kp["eb"]                                # (T, A, 4E)
    # pack_padded_sequence mask: 1.0 while t < len, else 0.0 (state freeze)
    tmask = (jnp.arange(T, dtype=jnp.int32)[:, None]
             < past_lens.astype(jnp.int32)[None, :]).astype(jnp.float32)         # (T, A)
    enc_rows = jnp.concatenate(
        [encx, tmask[..., None], jnp.zeros((T, A, G - 4 * E - 1), jnp.float32)],
        axis=-1)                                                                 # (T, A, G)

    # decoder step-0 input projection (vel @ W_x + b) and start positions, one row each
    x0 = jnp.dot(decode_start_vel.astype(jnp.float32), kp["dWx_p"]) + kp["db_p"]  # (A, G)
    pos_row = jnp.concatenate(
        [decode_start_pos.astype(jnp.float32), jnp.zeros((A, G - 2), jnp.float32)],
        axis=-1)                                                                 # (A, G)

    data = jnp.concatenate([enc_rows, x0[None], pos_row[None]], axis=0)          # (T+2, A, G)

    vmem = pl.BlockSpec(memory_space=pltpu.MemorySpace.VMEM)
    out_flat = pl.pallas_call(
        fused_enc_dec_kernel,
        out_shape=jax.ShapeDtypeStruct((A, 2 * nfuture), jnp.float32),
        in_specs=[vmem, vmem, vmem],
        out_specs=vmem,
        # TODO(synk): at this toy size (A=8) a grid-less single-core kernel is optimal;
        # for large agent counts add a ('parallel',) agent-block grid (v7x second TC).
    )(data, kp["w_slab"], kp["b_slab"])

    pred_all = out_flat.reshape(A, nfuture, 2)        # per-agent (nfuture, 2) trajectories
    # `predicted_trajs.permute(1, 0, 2)` + boolean-mask filtering, applied once at the end
    return pred_all[mask_idx]                         # (N, nfuture, 2)


# ----------------------------------------------------------------------------
if __name__ == "__main__":
    agent_embed_dim = 32
    noise_dim = 16
    lstm_layers = 1          # required for the module's .squeeze(0) semantics
    nfuture = 5
    A = 8                    # total agents
    T_obs = 6

    key = jax.random.PRNGKey(0)
    kp_key, k1, k2, k3 = jax.random.split(key, 4)
    params = init_params(kp_key, agent_embed_dim, noise_dim)
    kparams = prepare_kernel_params(params, agent_embed_dim, noise_dim)

    past_agents_traj = jax.random.normal(k1, (A, T_obs, 2), jnp.float32)
    past_agents_traj_len = jnp.array([6, 4, 6, 3, 5, 6, 2, 6], jnp.int32)   # per-agent lengths
    future_agent_masks = np.array([True, False, True, True, False, True, True, False])
    mask_idx = jnp.asarray(np.nonzero(future_agent_masks)[0], jnp.int32)    # static-size select
    decode_start_vel = jax.random.normal(k2, (A, 2), jnp.float32)
    decode_start_pos = jax.random.normal(k3, (A, 2), jnp.float32)

    # TODO(synk): stochastic=True branch (torch.randn noise) is not exercised by forward();
    # the kernel implements the stochastic=False zero-noise path.
    out = simple_encoder_decoder(kparams, past_agents_traj, past_agents_traj_len,
                                 mask_idx, decode_start_vel, decode_start_pos, nfuture)
    out = jax.block_until_ready(out)
    assert out.shape == (int(future_agent_masks.sum()), nfuture, 2), out.shape
    assert bool(jnp.all(jnp.isfinite(out)))
    print("KERNEL_OK")
</pallas_src>

<mosaic_0001>
module attributes {stable_mosaic.version = 11 : i64} {
  func.func @fused_enc_dec_kernel(%arg0: memref<8x8x256xf32, #tpu.memory_space<vmem>>, %arg1: memref<224x256xbf16, #tpu.memory_space<vmem>>, %arg2: memref<2x256xf32, #tpu.memory_space<vmem>>, %arg3: memref<8x10xf32, #tpu.memory_space<vmem>>) attributes {dimension_semantics = [], scalar_prefetch = 0 : i64, scratch_operands = 0 : i64, tpu.core_type = #tpu.core_type<tc>} {
    %c0 = arith.constant 0 : index
    %c0_0 = arith.constant 0 : index
    %0 = vector.load %arg1[%c0, %c0_0] : memref<224x256xbf16, #tpu.memory_space<vmem>>, vector<32x128xbf16>
    %cst = arith.constant 0.000000e+00 : f32
    %1 = vector.broadcast %cst : f32 to vector<8x32xf32>
    %cst_1 = arith.constant 0.000000e+00 : f32
    %2 = vector.broadcast %cst_1 : f32 to vector<8x32xf32>
    %c0_2 = arith.constant 0 : index
    %c0_3 = arith.constant 0 : index
    %c0_4 = arith.constant 0 : index
    %3 = vector.load %arg0[%c0_2, %c0_3, %c0_4] : memref<8x8x256xf32, #tpu.memory_space<vmem>>, vector<1x8x256xf32>
    %4 = vector.shape_cast %3 : vector<1x8x256xf32> to vector<8x256xf32>
    %5 = vector.extract_strided_slice %4 {offsets = [0, 0], sizes = [8, 128], strides = [1, 1]} : vector<8x256xf32> to vector<8x128xf32>
    %6 = vector.extract_strided_slice %4 {offsets = [0, 128], sizes = [8, 1], strides = [1, 1]} : vector<8x256xf32> to vector<8x1xf32>
    %7 = arith.truncf %1 : vector<8x32xf32> to vector<8x32xbf16>
    %cst_5 = arith.constant dense<0.000000e+00> : vector<8x128xf32>
    %8 = tpu.matmul %7, %0, %cst_5 {dimension_numbers = #tpu.dot_dimension_numbers<[1], [0], [0], [1], [0, 0, 1, 1], [], []>} : vector<8x32xbf16>, vector<32x128xbf16>, vector<8x128xf32> -> vector<8x128xf32>
    %9 = arith.addf %5, %8 : vector<8x128xf32>
    %10 = arith.negf %9 : vector<8x128xf32>
    %11 = math.exp %10 : vector<8x128xf32>
    %cst_6 = arith.constant 1.000000e+00 : f32
    %12 = vector.broadcast %cst_6 : f32 to vector<8x128xf32>
    %13 = arith.addf %12, %11 : vector<8x128xf32>
    %14 = arith.divf %12, %13 : vector<8x128xf32>
    %15 = math.tanh %9 : vector<8x128xf32>
    %16 = vector.extract_strided_slice %14 {offsets = [0, 0], sizes = [8, 32], strides = [1, 1]} : vector<8x128xf32> to vector<8x32xf32>
    %17 = vector.extract_strided_slice %14 {offsets = [0, 32], sizes = [8, 32], strides = [1, 1]} : vector<8x128xf32> to vector<8x32xf32>
    %18 = vector.extract_strided_slice %15 {offsets = [0, 64], sizes = [8, 32], strides = [1, 1]} : vector<8x128xf32> to vector<8x32xf32>
    %19 = vector.extract_strided_slice %14 {offsets = [0, 96], sizes = [8, 32], strides = [1, 1]} : vector<8x128xf32> to vector<8x32xf32>
    %20 = arith.mulf %17, %2 : vector<8x32xf32>
    %21 = arith.mulf %16, %18 : vector<8x32xf32>
    %22 = arith.addf %20, %21 : vector<8x32xf32>
    %23 = math.tanh %22 : vector<8x32xf32>
    %24 = arith.mulf %19, %23 : vector<8x32xf32>
    %25 = arith.subf %24, %1 : vector<8x32xf32>
    %26 = vector.broadcast %6 : vector<8x1xf32> to vector<8x32xf32>
    %27 = arith.mulf %26, %25 : vector<8x32xf32>
    %28 = arith.addf %1, %27 : vector<8x32xf32>
    %29 = arith.subf %22, %2 : vector<8x32xf32>
    %30 = vector.broadcast %6 : vector<8x1xf32> to vector<8x32xf32>
    %31 = arith.mulf %30, %29 : vector<8x32xf32>
    %32 = arith.addf %2, %31 : vector<8x32xf32>
    %c1 = arith.constant 1 : index
    %c0_7 = arith.constant 0 : index
    %c0_8 = arith.constant 0 : index
    %33 = vector.load %arg0[%c1, %c0_7, %c0_8] : memref<8x8x256xf32, #tpu.memory_space<vmem>>, vector<1x8x256xf32>
    %34 = vector.shape_cast %33 : vector<1x8x256xf32> to vector<8x256xf32>
    %35 = vector.extract_strided_slice %34 {offsets = [0, 0], sizes = [8, 128], strides = [1, 1]} : vector<8x256xf32> to vector<8x128xf32>
    %36 = vector.extract_strided_slice %34 {offsets = [0, 128], sizes = [8, 1], strides = [1, 1]} : vector<8x256xf32> to vector<8x1xf32>
    %37 = arith.truncf %28 : vector<8x32xf32> to vector<8x32xbf16>
    %cst_9 = arith.constant dense<0.000000e+00> : vector<8x128xf32>
    %38 = tpu.matmul %37, %0, %cst_9 {dimension_numbers = #tpu.dot_dimension_numbers<[1], [0], [0], [1], [0, 0, 1, 1], [], []>} : vector<8x32xbf16>, vector<32x128xbf16>, vector<8x128xf32> -> vector<8x128xf32>
    %39 = arith.addf %35, %38 : vector<8x128xf32>
    %40 = arith.negf %39 : vector<8x128xf32>
    %41 = math.exp %40 : vector<8x128xf32>
    %cst_10 = arith.constant 1.000000e+00 : f32
    %42 = vector.broadcast %cst_10 : f32 to vector<8x128xf32>
    %43 = arith.addf %42, %41 : vector<8x128xf32>
    %44 = arith.divf %42, %43 : vector<8x128xf32>
    %45 = math.tanh %39 : vector<8x128xf32>
    %46 = vector.extract_strided_slice %44 {offsets = [0, 0], sizes = [8, 32], strides = [1, 1]} : vector<8x128xf32> to vector<8x32xf32>
    %47 = vector.extract_strided_slice %44 {offsets = [0, 32], sizes = [8, 32], strides = [1, 1]} : vector<8x128xf32> to vector<8x32xf32>
    %48 = vector.extract_strided_slice %45 {offsets = [0, 64], sizes = [8, 32], strides = [1, 1]} : vector<8x128xf32> to vector<8x32xf32>
    %49 = vector.extract_strided_slice %44 {offsets = [0, 96], sizes = [8, 32], strides = [1, 1]} : vector<8x128xf32> to vector<8x32xf32>
    %50 = arith.mulf %47, %32 : vector<8x32xf32>
    %51 = arith.mulf %46, %48 : vector<8x32xf32>
    %52 = arith.addf %50, %51 : vector<8x32xf32>
    %53 = math.tanh %52 : vector<8x32xf32>
    %54 = arith.mulf %49, %53 : vector<8x32xf32>
    %55 = arith.subf %54, %28 : vector<8x32xf32>
    %56 = vector.broadcast %36 : vector<8x1xf32> to vector<8x32xf32>
    %57 = arith.mulf %56, %55 : vector<8x32xf32>
    %58 = arith.addf %28, %57 : vector<8x32xf32>
    %59 = arith.subf %52, %32 : vector<8x32xf32>
    %60 = vector.broadcast %36 : vector<8x1xf32> to vector<8x32xf32>
    %61 = arith.mulf %60, %59 : vector<8x32xf32>
    %62 = arith.addf %32, %61 : vector<8x32xf32>
    %c2 = arith.constant 2 : index
    %c0_11 = arith.constant 0 : index
    %c0_12 = arith.constant 0 : index
    %63 = vector.load %arg0[%c2, %c0_11, %c0_12] : memref<8x8x256xf32, #tpu.memory_space<vmem>>, vector<1x8x256xf32>
    %64 = vector.shape_cast %63 : vector<1x8x256xf32> to vector<8x256xf32>
    %65 = vector.extract_strided_slice %64 {offsets = [0, 0], sizes = [8, 128], strides = [1, 1]} : vector<8x256xf32> to vector<8x128xf32>
    %66 = vector.extract_strided_slice %64 {offsets = [0, 128], sizes = [8, 1], strides = [1, 1]} : vector<8x256xf32> to vector<8x1xf32>
    %67 = arith.truncf %58 : vector<8x32xf32> to vector<8x32xbf16>
    %cst_13 = arith.constant dense<0.000000e+00> : vector<8x128xf32>
    %68 = tpu.matmul %67, %0, %cst_13 {dimension_numbers = #tpu.dot_dimension_numbers<[1], [0], [0], [1], [0, 0, 1, 1], [], []>} : vector<8x32xbf16>, vector<32x128xbf16>, vector<8x128xf32> -> vector<8x128xf32>
    %69 = arith.addf %65, %68 : vector<8x128xf32>
    %70 = arith.negf %69 : vector<8x128xf32>
    %71 = math.exp %70 : vector<8x128xf32>
    %cst_14 = arith.constant 1.000000e+00 : f32
    %72 = vector.broadcast %cst_14 : f32 to vector<8x128xf32>
    %73 = arith.addf %72, %71 : vector<8x128xf32>
    %74 = arith.divf %72, %73 : vector<8x128xf32>
    %75 = math.tanh %69 : vector<8x128xf32>
    %76 = vector.extract_strided_slice %74 {offsets = [0, 0], sizes = [8, 32], strides = [1, 1]} : vector<8x128xf32> to vector<8x32xf32>
    %77 = vector.extract_strided_slice %74 {offsets = [0, 32], sizes = [8, 32], strides = [1, 1]} : vector<8x128xf32> to vector<8x32xf32>
    %78 = vector.extract_strided_slice %75 {offsets = [0, 64], sizes = [8, 32], strides = [1, 1]} : vector<8x128xf32> to vector<8x32xf32>
    %79 = vector.extract_strided_slice %74 {offsets = [0, 96], sizes = [8, 32], strides = [1, 1]} : vector<8x128xf32> to vector<8x32xf32>
    %80 = arith.mulf %77, %62 : vector<8x32xf32>
    %81 = arith.mulf %76, %78 : vector<8x32xf32>
    %82 = arith.addf %80, %81 : vector<8x32xf32>
    %83 = math.tanh %82 : vector<8x32xf32>
    %84 = arith.mulf %79, %83 : vector<8x32xf32>
    %85 = arith.subf %84, %58 : vector<8x32xf32>
    %86 = vector.broadcast %66 : vector<8x1xf32> to vector<8x32xf32>
    %87 = arith.mulf %86, %85 : vector<8x32xf32>
    %88 = arith.addf %58, %87 : vector<8x32xf32>
    %89 = arith.subf %82, %62 : vector<8x32xf32>
    %90 = vector.broadcast %66 : vector<8x1xf32> to vector<8x32xf32>
    %91 = arith.mulf %90, %89 : vector<8x32xf32>
    %92 = arith.addf %62, %91 : vector<8x32xf32>
    %c3 = arith.constant 3 : index
    %c0_15 = arith.constant 0 : index
    %c0_16 = arith.constant 0 : index
    %93 = vector.load %arg0[%c3, %c0_15, %c0_16] : memref<8x8x256xf32, #tpu.memory_space<vmem>>, vector<1x8x256xf32>
    %94 = vector.shape_cast %93 : vector<1x8x256xf32> to vector<8x256xf32>
    %95 = vector.extract_strided_slice %94 {offsets = [0, 0], sizes = [8, 128], strides = [1, 1]} : vector<8x256xf32> to vector<8x128xf32>
    %96 = vector.extract_strided_slice %94 {offsets = [0, 128], sizes = [8, 1], strides = [1, 1]} : vector<8x256xf32> to vector<8x1xf32>
    %97 = arith.truncf %88 : vector<8x32xf32> to vector<8x32xbf16>
    %cst_17 = arith.constant dense<0.000000e+00> : vector<8x128xf32>
    %98 = tpu.matmul %97, %0, %cst_17 {dimension_numbers = #tpu.dot_dimension_numbers<[1], [0], [0], [1], [0, 0, 1, 1], [], []>} : vector<8x32xbf16>, vector<32x128xbf16>, vector<8x128xf32> -> vector<8x128xf32>
    %99 = arith.addf %95, %98 : vector<8x128xf32>
    %100 = arith.negf %99 : vector<8x128xf32>
    %101 = math.exp %100 : vector<8x128xf32>
    %cst_18 = arith.constant 1.000000e+00 : f32
    %102 = vector.broadcast %cst_18 : f32 to vector<8x128xf32>
    %103 = arith.addf %102, %101 : vector<8x128xf32>
    %104 = arith.divf %102, %103 : vector<8x128xf32>
    %105 = math.tanh %99 : vector<8x128xf32>
    %106 = vector.extract_strided_slice %104 {offsets = [0, 0], sizes = [8, 32], strides = [1, 1]} : vector<8x128xf32> to vector<8x32xf32>
    %107 = vector.extract_strided_slice %104 {offsets = [0, 32], sizes = [8, 32], strides = [1, 1]} : vector<8x128xf32> to vector<8x32xf32>
    %108 = vector.extract_strided_slice %105 {offsets = [0, 64], sizes = [8, 32], strides = [1, 1]} : vector<8x128xf32> to vector<8x32xf32>
    %109 = vector.extract_strided_slice %104 {offsets = [0, 96], sizes = [8, 32], strides = [1, 1]} : vector<8x128xf32> to vector<8x32xf32>
    %110 = arith.mulf %107, %92 : vector<8x32xf32>
    %111 = arith.mulf %106, %108 : vector<8x32xf32>
    %112 = arith.addf %110, %111 : vector<8x32xf32>
    %113 = math.tanh %112 : vector<8x32xf32>
    %114 = arith.mulf %109, %113 : vector<8x32xf32>
    %115 = arith.subf %114, %88 : vector<8x32xf32>
    %116 = vector.broadcast %96 : vector<8x1xf32> to vector<8x32xf32>
    %117 = arith.mulf %116, %115 : vector<8x32xf32>
    %118 = arith.addf %88, %117 : vector<8x32xf32>
    %119 = arith.subf %112, %92 : vector<8x32xf32>
    %120 = vector.broadcast %96 : vector<8x1xf32> to vector<8x32xf32>
    %121 = arith.mulf %120, %119 : vector<8x32xf32>
    %122 = arith.addf %92, %121 : vector<8x32xf32>
    %c4 = arith.constant 4 : index
    %c0_19 = arith.constant 0 : index
    %c0_20 = arith.constant 0 : index
    %123 = vector.load %arg0[%c4, %c0_19, %c0_20] : memref<8x8x256xf32, #tpu.memory_space<vmem>>, vector<1x8x256xf32>
    %124 = vector.shape_cast %123 : vector<1x8x256xf32> to vector<8x256xf32>
    %125 = vector.extract_strided_slice %124 {offsets = [0, 0], sizes = [8, 128], strides = [1, 1]} : vector<8x256xf32> to vector<8x128xf32>
    %126 = vector.extract_strided_slice %124 {offsets = [0, 128], sizes = [8, 1], strides = [1, 1]} : vector<8x256xf32> to vector<8x1xf32>
    %127 = arith.truncf %118 : vector<8x32xf32> to vector<8x32xbf16>
    %cst_21 = arith.constant dense<0.000000e+00> : vector<8x128xf32>
    %128 = tpu.matmul %127, %0, %cst_21 {dimension_numbers = #tpu.dot_dimension_numbers<[1], [0], [0], [1], [0, 0, 1, 1], [], []>} : vector<8x32xbf16>, vector<32x128xbf16>, vector<8x128xf32> -> vector<8x128xf32>
    %129 = arith.addf %125, %128 : vector<8x128xf32>
    %130 = arith.negf %129 : vector<8x128xf32>
    %131 = math.exp %130 : vector<8x128xf32>
    %cst_22 = arith.constant 1.000000e+00 : f32
    %132 = vector.broadcast %cst_22 : f32 to vector<8x128xf32>
    %133 = arith.addf %132, %131 : vector<8x128xf32>
    %134 = arith.divf %132, %133 : vector<8x128xf32>
    %135 = math.tanh %129 : vector<8x128xf32>
    %136 = vector.extract_strided_slice %134 {offsets = [0, 0], sizes = [8, 32], strides = [1, 1]} : vector<8x128xf32> to vector<8x32xf32>
    %137 = vector.extract_strided_slice %134 {offsets = [0, 32], sizes = [8, 32], strides = [1, 1]} : vector<8x128xf32> to vector<8x32xf32>
    %138 = vector.extract_strided_slice %135 {offsets = [0, 64], sizes = [8, 32], strides = [1, 1]} : vector<8x128xf32> to vector<8x32xf32>
    %139 = vector.extract_strided_slice %134 {offsets = [0, 96], sizes = [8, 32], strides = [1, 1]} : vector<8x128xf32> to vector<8x32xf32>
    %140 = arith.mulf %137, %122 : vector<8x32xf32>
    %141 = arith.mulf %136, %138 : vector<8x32xf32>
    %142 = arith.addf %140, %141 : vector<8x32xf32>
    %143 = math.tanh %142 : vector<8x32xf32>
    %144 = arith.mulf %139, %143 : vector<8x32xf32>
    %145 = arith.subf %144, %118 : vector<8x32xf32>
    %146 = vector.broadcast %126 : vector<8x1xf32> to vector<8x32xf32>
    %147 = arith.mulf %146, %145 : vector<8x32xf32>
    %148 = arith.addf %118, %147 : vector<8x32xf32>
    %149 = arith.subf %142, %122 : vector<8x32xf32>
    %150 = vector.broadcast %126 : vector<8x1xf32> to vector<8x32xf32>
    %151 = arith.mulf %150, %149 : vector<8x32xf32>
    %152 = arith.addf %122, %151 : vector<8x32xf32>
    %c5 = arith.constant 5 : index
    %c0_23 = arith.constant 0 : index
    %c0_24 = arith.constant 0 : index
    %153 = vector.load %arg0[%c5, %c0_23, %c0_24] : memref<8x8x256xf32, #tpu.memory_space<vmem>>, vector<1x8x256xf32>
    %154 = vector.shape_cast %153 : vector<1x8x256xf32> to vector<8x256xf32>
    %155 = vector.extract_strided_slice %154 {offsets = [0, 0], sizes = [8, 128], strides = [1, 1]} : vector<8x256xf32> to vector<8x128xf32>
    %156 = vector.extract_strided_slice %154 {offsets = [0, 128], sizes = [8, 1], strides = [1, 1]} : vector<8x256xf32> to vector<8x1xf32>
    %157 = arith.truncf %148 : vector<8x32xf32> to vector<8x32xbf16>
    %cst_25 = arith.constant dense<0.000000e+00> : vector<8x128xf32>
    %158 = tpu.matmul %157, %0, %cst_25 {dimension_numbers = #tpu.dot_dimension_numbers<[1], [0], [0], [1], [0, 0, 1, 1], [], []>} : vector<8x32xbf16>, vector<32x128xbf16>, vector<8x128xf32> -> vector<8x128xf32>
    %159 = arith.addf %155, %158 : vector<8x128xf32>
    %160 = arith.negf %159 : vector<8x128xf32>
    %161 = math.exp %160 : vector<8x128xf32>
    %cst_26 = arith.constant 1.000000e+00 : f32
    %162 = vector.broadcast %cst_26 : f32 to vector<8x128xf32>
    %163 = arith.addf %162, %161 : vector<8x128xf32>
    %164 = arith.divf %162, %163 : vector<8x128xf32>
    %165 = math.tanh %159 : vector<8x128xf32>
    %166 = vector.extract_strided_slice %164 {offsets = [0, 0], sizes = [8, 32], strides = [1, 1]} : vector<8x128xf32> to vector<8x32xf32>
    %167 = vector.extract_strided_slice %164 {offsets = [0, 32], sizes = [8, 32], strides = [1, 1]} : vector<8x128xf32> to vector<8x32xf32>
    %168 = vector.extract_strided_slice %165 {offsets = [0, 64], sizes = [8, 32], strides = [1, 1]} : vector<8x128xf32> to vector<8x32xf32>
    %169 = vector.extract_strided_slice %164 {offsets = [0, 96], sizes = [8, 32], strides = [1, 1]} : vector<8x128xf32> to vector<8x32xf32>
    %170 = arith.mulf %167, %152 : vector<8x32xf32>
    %171 = arith.mulf %166, %168 : vector<8x32xf32>
    %172 = arith.addf %170, %171 : vector<8x32xf32>
    %173 = math.tanh %172 : vector<8x32xf32>
    %174 = arith.mulf %169, %173 : vector<8x32xf32>
    %175 = arith.subf %174, %148 : vector<8x32xf32>
    %176 = vector.broadcast %156 : vector<8x1xf32> to vector<8x32xf32>
    %177 = arith.mulf %176, %175 : vector<8x32xf32>
    %178 = arith.addf %148, %177 : vector<8x32xf32>
    %c32 = arith.constant 32 : index
    %c0_27 = arith.constant 0 : index
    %179 = vector.load %arg1[%c32, %c0_27] : memref<224x256xbf16, #tpu.memory_space<vmem>>, vector<64x256xbf16>
    %c96 = arith.constant 96 : index
    %c0_28 = arith.constant 0 : index
    %180 = vector.load %arg1[%c96, %c0_28] : memref<224x256xbf16, #tpu.memory_space<vmem>>, vector<64x256xbf16>
    %c0_29 = arith.constant 0 : index
    %c0_30 = arith.constant 0 : index
    %181 = vector.load %arg2[%c0_29, %c0_30] : memref<2x256xf32, #tpu.memory_space<vmem>>, vector<2x256xf32>
    %182 = vector.extract_strided_slice %181 {offsets = [0, 0], sizes = [1, 256], strides = [1, 1]} : vector<2x256xf32> to vector<1x256xf32>
    %cst_31 = arith.constant 0.000000e+00 : f32
    %183 = vector.broadcast %cst_31 : f32 to vector<8x32xf32>
    %184 = tpu.concatenate %178, %183 in 1 : vector<8x32xf32>, vector<8x32xf32> -> vector<8x64xf32>
    %cst_32 = arith.constant 0.000000e+00 : f32
    %185 = vector.broadcast %cst_32 : f32 to vector<8x64xf32>
    %c6 = arith.constant 6 : index
    %c0_33 = arith.constant 0 : index
    %c0_34 = arith.constant 0 : index
    %186 = vector.load %arg0[%c6, %c0_33, %c0_34] : memref<8x8x256xf32, #tpu.memory_space<vmem>>, vector<1x8x256xf32>
    %187 = vector.shape_cast %186 : vector<1x8x256xf32> to vector<8x256xf32>
    %188 = arith.truncf %184 : vector<8x64xf32> to vector<8x64xbf16>
    %cst_35 = arith.constant dense<0.000000e+00> : vector<8x256xf32>
    %189 = tpu.matmul %188, %179, %cst_35 {dimension_numbers = #tpu.dot_dimension_numbers<[1], [0], [0], [1], [0, 0, 1, 1], [], []>} : vector<8x64xbf16>, vector<64x256xbf16>, vector<8x256xf32> -> vector<8x256xf32>
    %190 = arith.addf %187, %189 : vector<8x256xf32>
    %191 = arith.negf %190 : vector<8x256xf32>
    %192 = math.exp %191 : vector<8x256xf32>
    %cst_36 = arith.constant 1.000000e+00 : f32
    %193 = vector.broadcast %cst_36 : f32 to vector<8x256xf32>
    %194 = arith.addf %193, %192 : vector<8x256xf32>
    %195 = arith.divf %193, %194 : vector<8x256xf32>
    %196 = math.tanh %190 : vector<8x256xf32>
    %197 = vector.extract_strided_slice %195 {offsets = [0, 0], sizes = [8, 64], strides = [1, 1]} : vector<8x256xf32> to vector<8x64xf32>
    %198 = vector.extract_strided_slice %195 {offsets = [0, 64], sizes = [8, 64], strides = [1, 1]} : vector<8x256xf32> to vector<8x64xf32>
    %199 = vector.extract_strided_slice %196 {offsets = [0, 128], sizes = [8, 64], strides = [1, 1]} : vector<8x256xf32> to vector<8x64xf32>
    %200 = vector.extract_strided_slice %195 {offsets = [0, 192], sizes = [8, 64], strides = [1, 1]} : vector<8x256xf32> to vector<8x64xf32>
    %201 = arith.mulf %198, %185 : vector<8x64xf32>
    %202 = arith.mulf %197, %199 : vector<8x64xf32>
    %203 = arith.addf %201, %202 : vector<8x64xf32>
    %204 = math.tanh %203 : vector<8x64xf32>
    %205 = arith.mulf %200, %204 : vector<8x64xf32>
    %206 = arith.truncf %205 : vector<8x64xf32> to vector<8x64xbf16>
    %cst_37 = arith.constant dense<0.000000e+00> : vector<8x256xf32>
    %207 = tpu.matmul %206, %180, %cst_37 {dimension_numbers = #tpu.dot_dimension_numbers<[1], [0], [0], [1], [0, 0, 1, 1], [], []>} : vector<8x64xbf16>, vector<64x256xbf16>, vector<8x256xf32> -> vector<8x256xf32>
    %208 = vector.broadcast %182 : vector<1x256xf32> to vector<8x256xf32>
    %209 = arith.addf %208, %207 : vector<8x256xf32>
    %210 = arith.negf %209 : vector<8x256xf32>
    %211 = math.exp %210 : vector<8x256xf32>
    %cst_38 = arith.constant 1.000000e+00 : f32
    %212 = vector.broadcast %cst_38 : f32 to vector<8x256xf32>
    %213 = arith.addf %212, %211 : vector<8x256xf32>
    %214 = arith.divf %212, %213 : vector<8x256xf32>
    %215 = math.tanh %209 : vector<8x256xf32>
    %216 = vector.extract_strided_slice %214 {offsets = [0, 0], sizes = [8, 64], strides = [1, 1]} : vector<8x256xf32> to vector<8x64xf32>
    %217 = vector.extract_strided_slice %214 {offsets = [0, 64], sizes = [8, 64], strides = [1, 1]} : vector<8x256xf32> to vector<8x64xf32>
    %218 = vector.extract_strided_slice %215 {offsets = [0, 128], sizes = [8, 64], strides = [1, 1]} : vector<8x256xf32> to vector<8x64xf32>
    %219 = vector.extract_strided_slice %214 {offsets = [0, 192], sizes = [8, 64], strides = [1, 1]} : vector<8x256xf32> to vector<8x64xf32>
    %220 = arith.mulf %217, %203 : vector<8x64xf32>
    %221 = arith.mulf %216, %218 : vector<8x64xf32>
    %222 = arith.addf %220, %221 : vector<8x64xf32>
    %223 = math.tanh %222 : vector<8x64xf32>
    %224 = arith.mulf %219, %223 : vector<8x64xf32>
    %225 = arith.truncf %224 : vector<8x64xf32> to vector<8x64xbf16>
    %cst_39 = arith.constant dense<0.000000e+00> : vector<8x256xf32>
    %226 = tpu.matmul %225, %180, %cst_39 {dimension_numbers = #tpu.dot_dimension_numbers<[1], [0], [0], [1], [0, 0, 1, 1], [], []>} : vector<8x64xbf16>, vector<64x256xbf16>, vector<8x256xf32> -> vector<8x256xf32>
    %227 = vector.broadcast %182 : vector<1x256xf32> to vector<8x256xf32>
    %228 = arith.addf %227, %226 : vector<8x256xf32>
    %229 = arith.negf %228 : vector<8x256xf32>
    %230 = math.exp %229 : vector<8x256xf32>
    %cst_40 = arith.constant 1.000000e+00 : f32
    %231 = vector.broadcast %cst_40 : f32 to vector<8x256xf32>
    %232 = arith.addf %231, %230 : vector<8x256xf32>
    %233 = arith.divf %231, %232 : vector<8x256xf32>
    %234 = math.tanh %228 : vector<8x256xf32>
    %235 = vector.extract_strided_slice %233 {offsets = [0, 0], sizes = [8, 64], strides = [1, 1]} : vector<8x256xf32> to vector<8x64xf32>
    %236 = vector.extract_strided_slice %233 {offsets = [0, 64], sizes = [8, 64], strides = [1, 1]} : vector<8x256xf32> to vector<8x64xf32>
    %237 = vector.extract_strided_slice %234 {offsets = [0, 128], sizes = [8, 64], strides = [1, 1]} : vector<8x256xf32> to vector<8x64xf32>
    %238 = vector.extract_strided_slice %233 {offsets = [0, 192], sizes = [8, 64], strides = [1, 1]} : vector<8x256xf32> to vector<8x64xf32>
    %239 = arith.mulf %236, %222 : vector<8x64xf32>
    %240 = arith.mulf %235, %237 : vector<8x64xf32>
    %241 = arith.addf %239, %240 : vector<8x64xf32>
    %242 = math.tanh %241 : vector<8x64xf32>
    %243 = arith.mulf %238, %242 : vector<8x64xf32>
    %244 = arith.truncf %243 : vector<8x64xf32> to vector<8x64xbf16>
    %cst_41 = arith.constant dense<0.000000e+00> : vector<8x256xf32>
    %245 = tpu.matmul %244, %180, %cst_41 {dimension_numbers = #tpu.dot_dimension_numbers<[1], [0], [0], [1], [0, 0, 1, 1], [], []>} : vector<8x64xbf16>, vector<64x256xbf16>, vector<8x256xf32> -> vector<8x256xf32>
    %246 = vector.broadcast %182 : vector<1x256xf32> to vector<8x256xf32>
    %247 = arith.addf %246, %245 : vector<8x256xf32>
    %248 = arith.negf %247 : vector<8x256xf32>
    %249 = math.exp %248 : vector<8x256xf32>
    %cst_42 = arith.constant 1.000000e+00 : f32
    %250 = vector.broadcast %cst_42 : f32 to vector<8x256xf32>
    %251 = arith.addf %250, %249 : vector<8x256xf32>
    %252 = arith.divf %250, %251 : vector<8x256xf32>
    %253 = math.tanh %247 : vector<8x256xf32>
    %254 = vector.extract_strided_slice %252 {offsets = [0, 0], sizes = [8, 64], strides = [1, 1]} : vector<8x256xf32> to vector<8x64xf32>
    %255 = vector.extract_strided_slice %252 {offsets = [0, 64], sizes = [8, 64], strides = [1, 1]} : vector<8x256xf32> to vector<8x64xf32>
    %256 = vector.extract_strided_slice %253 {offsets = [0, 128], sizes = [8, 64], strides = [1, 1]} : vector<8x256xf32> to vector<8x64xf32>
    %257 = vector.extract_strided_slice %252 {offsets = [0, 192], sizes = [8, 64], strides = [1, 1]} : vector<8x256xf32> to vector<8x64xf32>
    %258 = arith.mulf %255, %241 : vector<8x64xf32>
    %259 = arith.mulf %254, %256 : vector<8x64xf32>
    %260 = arith.addf %258, %259 : vector<8x64xf32>
    %261 = math.tanh %260 : vector<8x64xf32>
    %262 = arith.mulf %257, %261 : vector<8x64xf32>
    %263 = arith.truncf %262 : vector<8x64xf32> to vector<8x64xbf16>
    %cst_43 = arith.constant dense<0.000000e+00> : vector<8x256xf32>
    %264 = tpu.matmul %263, %180, %cst_43 {dimension_numbers = #tpu.dot_dimension_numbers<[1], [0], [0], [1], [0, 0, 1, 1], [], []>} : vector<8x64xbf16>, vector<64x256xbf16>, vector<8x256xf32> -> vector<8x256xf32>
    %265 = vector.broadcast %182 : vector<1x256xf32> to vector<8x256xf32>
    %266 = arith.addf %265, %264 : vector<8x256xf32>
    %267 = arith.negf %266 : vector<8x256xf32>
    %268 = math.exp %267 : vector<8x256xf32>
    %cst_44 = arith.constant 1.000000e+00 : f32
    %269 = vector.broadcast %cst_44 : f32 to vector<8x256xf32>
    %270 = arith.addf %269, %268 : vector<8x256xf32>
    %271 = arith.divf %269, %270 : vector<8x256xf32>
    %272 = math.tanh %266 : vector<8x256xf32>
    %273 = vector.extract_strided_slice %271 {offsets = [0, 0], sizes = [8, 64], strides = [1, 1]} : vector<8x256xf32> to vector<8x64xf32>
    %274 = vector.extract_strided_slice %271 {offsets = [0, 64], sizes = [8, 64], strides = [1, 1]} : vector<8x256xf32> to vector<8x64xf32>
    %275 = vector.extract_strided_slice %272 {offsets = [0, 128], sizes = [8, 64], strides = [1, 1]} : vector<8x256xf32> to vector<8x64xf32>
    %276 = vector.extract_strided_slice %271 {offsets = [0, 192], sizes = [8, 64], strides = [1, 1]} : vector<8x256xf32> to vector<8x64xf32>
    %277 = arith.mulf %274, %260 : vector<8x64xf32>
    %278 = arith.mulf %273, %275 : vector<8x64xf32>
    %279 = arith.addf %277, %278 : vector<8x64xf32>
    %280 = math.tanh %279 : vector<8x64xf32>
    %281 = arith.mulf %276, %280 : vector<8x64xf32>
    %c160 = arith.constant 160 : index
    %c0_45 = arith.constant 0 : index
    %282 = vector.load %arg1[%c160, %c0_45] : memref<224x256xbf16, #tpu.memory_space<vmem>>, vector<64x256xbf16>
    %283 = vector.extract_strided_slice %282 {offsets = [0, 0], sizes = [64, 2], strides = [1, 1]} : vector<64x256xbf16> to vector<64x2xbf16>
    %284 = vector.extract_strided_slice %181 {offsets = [1, 0], sizes = [1, 2], strides = [1, 1]} : vector<2x256xf32> to vector<1x2xf32>
    %285 = tpu.concatenate %205, %224, %243, %262, %281 in 0 : vector<8x64xf32>, vector<8x64xf32>, vector<8x64xf32>, vector<8x64xf32>, vector<8x64xf32> -> vector<40x64xf32>
    %286 = arith.truncf %285 : vector<40x64xf32> to vector<40x64xbf16>
    %cst_46 = arith.constant dense<0.000000e+00> : vector<40x2xf32>
    %287 = tpu.matmul %286, %283, %cst_46 {dimension_numbers = #tpu.dot_dimension_numbers<[1], [0], [0], [1], [0, 0, 1, 1], [], []>} : vector<40x64xbf16>, vector<64x2xbf16>, vector<40x2xf32> -> vector<40x2xf32>
    %288 = vector.broadcast %284 : vector<1x2xf32> to vector<40x2xf32>
    %289 = arith.addf %287, %288 : vector<40x2xf32>
    %c7 = arith.constant 7 : index
    %c0_47 = arith.constant 0 : index
    %c0_48 = arith.constant 0 : index
    %290 = vector.load %arg0[%c7, %c0_47, %c0_48] : memref<8x8x256xf32, #tpu.memory_space<vmem>>, vector<1x8x256xf32>
    %291 = vector.shape_cast %290 : vector<1x8x256xf32> to vector<8x256xf32>
    %292 = vector.extract_strided_slice %291 {offsets = [0, 0], sizes = [8, 2], strides = [1, 1]} : vector<8x256xf32> to vector<8x2xf32>
    %293 = vector.extract_strided_slice %289 {offsets = [0, 0], sizes = [8, 2], strides = [1, 1]} : vector<40x2xf32> to vector<8x2xf32>
    %294 = arith.addf %292, %293 : vector<8x2xf32>
    %295 = vector.extract_strided_slice %289 {offsets = [8, 0], sizes = [8, 2], strides = [1, 1]} : vector<40x2xf32> to vector<8x2xf32>
    %296 = arith.addf %294, %295 : vector<8x2xf32>
    %297 = vector.extract_strided_slice %289 {offsets = [16, 0], sizes = [8, 2], strides = [1, 1]} : vector<40x2xf32> to vector<8x2xf32>
    %298 = arith.addf %296, %297 : vector<8x2xf32>
    %299 = vector.extract_strided_slice %289 {offsets = [24, 0], sizes = [8, 2], strides = [1, 1]} : vector<40x2xf32> to vector<8x2xf32>
    %300 = arith.addf %298, %299 : vector<8x2xf32>
    %301 = vector.extract_strided_slice %289 {offsets = [32, 0], sizes = [8, 2], strides = [1, 1]} : vector<40x2xf32> to vector<8x2xf32>
    %302 = arith.addf %300, %301 : vector<8x2xf32>
    %303 = tpu.concatenate %294, %296, %298, %300, %302 in 1 : vector<8x2xf32>, vector<8x2xf32>, vector<8x2xf32>, vector<8x2xf32>, vector<8x2xf32> -> vector<8x10xf32>
    %c0_49 = arith.constant 0 : index
    %c0_50 = arith.constant 0 : index
    %304 = vector.load %arg3[%c0_49, %c0_50] : memref<8x10xf32, #tpu.memory_space<vmem>>, vector<8x10xf32>
    tpu.vector_store %arg3[%c0_49, %c0_50], %303 {strides = array<i32>} : memref<8x10xf32, #tpu.memory_space<vmem>>, vector<8x10xf32>,
    return
  }
}

</mosaic_0001>

<llo_original>
// kernel: tpu_custom_call.1
$region0: #{tpu_custom_call.1}
  #allocation0 [shape = 'u32[]', space=smem, size = 0x4, offset = 0x4, fixed_abs, tag = 'smem constant byte address 0x4 - core index']
  #allocation1 [shape = 'u32[72,128]{1,0:T(1,128)}', space=vmem, size = 0x9000, scoped, tag = 'internal scratch']
  %s0 = inlined_call_operand.hbm [shape: f32[8,8,256], index: 0, kind: input, shape index: {}]
  %s1 = inlined_call_operand.hbm [shape: bf16[224,256], index: 1, kind: input, shape index: {}]
  %s2 = inlined_call_operand.hbm [shape: f32[2,256], index: 2, kind: input, shape index: {}]
  %s3 = inlined_call_operand.hbm [shape: f32[8,10], index: 3, kind: output, shape index: {}]
  %s4 = sld [smem:[#allocation0]]
  $region34: #{tpu_custom_call.1} parent=0
    _
  %s6 = ssub.s32 1, %s4
  %s7 = scalar_select 0, %s6, %s4
  $region1: #{tpu_custom_call.1} parent=0
    #allocation2 [shape = 'u8[65536]{0}', space=vmem, size = 0x10000, scoped, tag = 'input window, operand 0, single buffered']
    #allocation3 [shape = 's32[1]{0}', space=sflag, size = 0x4, scoped, tag = 'scoped memory for tpu_custom_call.1']
    #allocation4 [shape = 's32[1]{0}', space=sflag, size = 0x4, scoped, tag = 'scoped memory for tpu_custom_call.1']
    #allocation5 [shape = 'u8[114688]{0}', space=vmem, size = 0x1c000, scoped, tag = 'input window, operand 1, single buffered']
    #allocation6 [shape = 's32[1]{0}', space=sflag, size = 0x4, scoped, tag = 'scoped memory for tpu_custom_call.1']
    #allocation7 [shape = 'u8[2048]{0}', space=vmem, size = 0x800, scoped, tag = 'input window, operand 2, single buffered']
    #allocation8 [shape = 'u8[4096]{0}', space=vmem, size = 0x1000, scoped, tag = 'output window, operand 0, single buffered']
    %8 = vsyncpa [#allocation3], 0
    %9 = vsyncpa [#allocation6], 0
    %10 = vsyncpa [#allocation4], 0
    // Predicated region
    $region2: #{tpu_custom_call.1} parent=1 // pred_check
      _
    $region3: #{tpu_custom_call.1} parent=1 // pred_check_branch
      %12 = sbr.rel (0) target = $region5
    $region4: #{tpu_custom_call.1} parent=1 // pred_region
      %14 = vsyncadd [#allocation3], 0
      %s15 = sshll.u32 %s0, 4
      %s16 = int_to_ptr.hbm [resolvable:$true] %s15
      %s17 = sshll.u32 [#allocation2], 4
      %s18 = int_to_ptr.vmem [resolvable:$true] %s17
      %23 = dma.hbm_to_vmem [thread:$0]  %s16, 2048, %s18, [#allocation3], 256, 256, 16
    $region5: #{tpu_custom_call.1} parent=1 // pred_fallthru
      _
    // Predicated region
    $region6: #{tpu_custom_call.1} parent=1 // pred_check
      _
    $region7: #{tpu_custom_call.1} parent=1 // pred_check_branch
      %25 = sbr.rel (0) target = $region9
    $region8: #{tpu_custom_call.1} parent=1 // pred_region
      %27 = vsyncadd [#allocation6], 0
      %s28 = sshll.u32 %s1, 4
      %s29 = int_to_ptr.hbm [resolvable:$true] %s28
      %s30 = sshll.u32 [#allocation5], 4
      %s31 = int_to_ptr.vmem [resolvable:$true] %s30
      %36 = dma.hbm_to_vmem [thread:$0]  %s29, 3584, %s31, [#allocation6], 128, 128, 8
    $region9: #{tpu_custom_call.1} parent=1 // pred_fallthru
      _
    // Predicated region
    $region10: #{tpu_custom_call.1} parent=1 // pred_check
      _
    $region11: #{tpu_custom_call.1} parent=1 // pred_check_branch
      %38 = sbr.rel (0) target = $region13
    $region12: #{tpu_custom_call.1} parent=1 // pred_region
      %40 = vsyncadd [#allocation6], 0
      %s42 = sshll.u32 %s2, 4
      %s43 = int_to_ptr.hbm [resolvable:$true] %s42
      %s44 = sshll.u32 [#allocation7], 4
      %s45 = int_to_ptr.vmem [resolvable:$true] %s44
      %47 = dma.hbm_to_vmem [thread:$0]  %s43, 64, %s45, [#allocation6]
    $region13: #{tpu_custom_call.1} parent=1 // pred_fallthru
      _
    // Predicated region
    $region14: #{tpu_custom_call.1} parent=1 // pred_check
      _
    $region15: #{tpu_custom_call.1} parent=1 // pred_check_branch
      %49 = sbr.rel (0) target = $region17
    $region16: #{tpu_custom_call.1} parent=1 // pred_region
      %51 = dma.done [#allocation3], 2048
    $region17: #{tpu_custom_call.1} parent=1 // pred_fallthru
      _
    // Predicated region
    $region18: #{tpu_custom_call.1} parent=1 // pred_check
      _
    $region19: #{tpu_custom_call.1} parent=1 // pred_check_branch
      %53 = sbr.rel (0) target = $region21
    $region20: #{tpu_custom_call.1} parent=1 // pred_region
      %55 = dma.done [#allocation6], 3584
    $region21: #{tpu_custom_call.1} parent=1 // pred_fallthru
      _
    // Predicated region
    $region22: #{tpu_custom_call.1} parent=1 // pred_check
      _
    $region23: #{tpu_custom_call.1} parent=1 // pred_check_branch
      %57 = sbr.rel (0) target = $region25
    $region24: #{tpu_custom_call.1} parent=1 // pred_region
      %59 = dma.done [#allocation6], 64
    $region25: #{tpu_custom_call.1} parent=1 // pred_fallthru
      _
    %v61 = vld [vmem:[#allocation5] sm:$0xf]
    %v62 = vld [vmem:[#allocation5 + $0x8] sm:$0xf]
    %v63 = vld [vmem:[#allocation5 + $0x10] sm:$0xf]
    %v64 = vld [vmem:[#allocation5 + $0x18] sm:$0xf]
    %v65 = vld [vmem:[#allocation2] sm:$0xff]
    %v66 = vld [vmem:[#allocation2 + $0x8] sm:$0xff]
    %v71 = vunpack.c.l.b16 %v61
    %v72 = vunpack.c.l.b16 %v62
    %v73 = vunpack.c.l.b16 %v63
    %v74 = vunpack.c.l.b16 %v64
    %v75 = vpack.c.b16 %v72, %v71
    %v76 = vpack.c.b16 %v74, %v73
    %vm79 = vcmask 261120
    %v81 = vsel %vm79, 0, 0
    %83 = vmatpush.bf16.msra.mxu0 0
    %84 = vmatpush.bf16.msra.mxu0 0
    %85 = vmatpush.bf16.msra.mxu0 0
    %86 = vmatpush.bf16.msra.mxu0 0
    %87 = vmatpush.bf16.msra.mxu0 0
    %88 = vmatpush.bf16.msra.mxu0 0
    %89 = vmatpush.bf16.msra.mxu0 %v76
    %90 = vmatpush.bf16.msra.mxu0 %v75
    %91 = vmatmul.bf16.gmra.mxu0 %v81
    %v92 = vpop.f32.mrf.mxu0
    %v93 = vadd.f32 0.0, %v92
    %v94 = vpop.f32.mrf.mxu0
    %95 = vdwg.mxu0
    %v96 = vadd.f32 %v65, %v93
    %v97 = vxor.u32 %v96, 2147483648
    %v98 = vmul.f32 %v97, 1.442695
    %v99 = vpow.pop %v98
    %v100 = vadd.f32 %v99, 1.0
    %v101 = vrcp.pop %v100
    %v102 = vmul.f32 %v100, %v101
    %v103 = vsub.f32 1.0, %v102
    %v104 = vmul.f32 %v101, %v103
    %v105 = vadd.f32 %v101, %v104
    %vm106 = vweird.f32 %v100
    %vm107 = vweird.f32 %v101
    %vm108 = vmor %vm106, %vm107
    %v109 = vsel %vm108, %v101, %v105
    %v110 = vand.u32 2147483647, %v100
    %vm111 = vcmp.eq.f32.partialorder %v110, 8.507059e+37
    %v112 = vand.u32 %v100, 2147483648
    %v113 = vor.u32 1.1754944e-38, %v112
    %v114 = vsel %vm111, %v113, %v109
    %v115 = vmul.f32 1.0, %v114
    %v116 = vtanh.pop %v96
    %v117 = vmul.f32 %v115, 0.0
    %119 = vrot.lane.b32.xlu0 %v116, 64
    %v120 = vpop.permute.xlu0 %119
    %v122 = vmul.f32 %v115, %v120
    %124 = vrot.lane.b32.xlu0 %v122, 32
    %v125 = vpop.permute.xlu0 %124
    %v127 = vadd.f32 %v117, %v125
    %v128 = vtanh.pop %v127
    %130 = vrot.lane.b32.xlu0 %v128, 64
    %v131 = vpop.permute.xlu0 %130
    %v133 = vmul.f32 %v115, %v131
    %135 = vset.pattern.permute.xlu0 0
    %136 = vperm.xlu0 %135, %v66
    %v137 = vpop.permute.xlu0 %136
    %v139 = vmul.f32 %v137, %v133
    %v140 = vadd.f32 %v139, 0.0
    %v141 = vmul.f32 %v137, %v127
    %v142 = vadd.f32 %v141, 0.0
    %s143 = scalar_lea.vmem [#allocation2], 16
    %v144 = vld [vmem:[%s143] sm:$0xff]
    %v145 = vld [vmem:[%s143 + $0x8] sm:$0xff]
    %v146 = vpack.c.bf16 %v140, %v140
    %148 = vrot.lane.b32.xlu0 %v146, 32
    %v149 = vpop.permute.xlu0 %148
    %v151 = vsel %vm79, %v149, 0
    %153 = vmatpush.bf16.msra.mxu0 0
    %154 = vmatpush.bf16.msra.mxu0 0
    %155 = vmatpush.bf16.msra.mxu0 0
    %156 = vmatpush.bf16.msra.mxu0 0
    %157 = vmatpush.bf16.msra.mxu0 0
    %158 = vmatpush.bf16.msra.mxu0 0
    %159 = vmatpush.bf16.msra.mxu0 %v76
    %160 = vmatpush.bf16.msra.mxu0 %v75
    %161 = vmatmul.bf16.gmra.mxu0 %v151
    %v162 = vpop.f32.mrf.mxu0
    %v163 = vadd.f32 0.0, %v162
    %v164 = vpop.f32.mrf.mxu0
    %165 = vdwg.mxu0
    %v166 = vadd.f32 %v144, %v163
    %v167 = vxor.u32 %v166, 2147483648
    %v168 = vmul.f32 %v167, 1.442695
    %v169 = vpow.pop %v168
    %v170 = vadd.f32 %v169, 1.0
    %v171 = vrcp.pop %v170
    %v172 = vmul.f32 %v170, %v171
    %v173 = vsub.f32 1.0, %v172
    %v174 = vmul.f32 %v171, %v173
    %v175 = vadd.f32 %v171, %v174
    %vm176 = vweird.f32 %v170
    %vm177 = vweird.f32 %v171
    %vm178 = vmor %vm176, %vm177
    %v179 = vsel %vm178, %v171, %v175
    %v180 = vand.u32 2147483647, %v170
    %vm181 = vcmp.eq.f32.partialorder %v180, 8.507059e+37
    %v182 = vand.u32 %v170, 2147483648
    %v183 = vor.u32 1.1754944e-38, %v182
    %v184 = vsel %vm181, %v183, %v179
    %v185 = vmul.f32 1.0, %v184
    %v186 = vtanh.pop %v166
    %v187 = vmul.f32 %v185, %v142
    %189 = vrot.lane.b32.xlu0 %v186, 64
    %v190 = vpop.permute.xlu0 %189
    %v192 = vmul.f32 %v185, %v190
    %194 = vrot.lane.b32.xlu0 %v192, 32
    %v195 = vpop.permute.xlu0 %194
    %v197 = vadd.f32 %v187, %v195
    %v198 = vtanh.pop %v197
    %200 = vrot.lane.b32.xlu0 %v198, 64
    %v201 = vpop.permute.xlu0 %200
    %v203 = vmul.f32 %v185, %v201
    %v204 = vsub.f32 %v203, %v140
    %206 = vset.pattern.permute.xlu0 0
    %207 = vperm.xlu0 %206, %v145
    %v208 = vpop.permute.xlu0 %207
    %v210 = vmul.f32 %v208, %v204
    %v211 = vadd.f32 %v140, %v210
    %v212 = vsub.f32 %v197, %v142
    %v213 = vmul.f32 %v208, %v212
    %v214 = vadd.f32 %v142, %v213
    %s215 = scalar_lea.vmem [#allocation2], 32
    %v216 = vld [vmem:[%s215] sm:$0xff]
    %v217 = vld [vmem:[%s215 + $0x8] sm:$0xff]
    %v218 = vpack.c.bf16 %v211, %v211
    %220 = vrot.lane.b32.xlu0 %v218, 32
    %v221 = vpop.permute.xlu0 %220
    %v223 = vsel %vm79, %v221, 0
    %225 = vmatpush.bf16.msra.mxu0 0
    %226 = vmatpush.bf16.msra.mxu0 0
    %227 = vmatpush.bf16.msra.mxu0 0
    %228 = vmatpush.bf16.msra.mxu0 0
    %229 = vmatpush.bf16.msra.mxu0 0
    %230 = vmatpush.bf16.msra.mxu0 0
    %231 = vmatpush.bf16.msra.mxu0 %v76
    %232 = vmatpush.bf16.msra.mxu0 %v75
    %233 = vmatmul.bf16.gmra.mxu0 %v223
    %v234 = vpop.f32.mrf.mxu0
    %v235 = vadd.f32 0.0, %v234
    %v236 = vpop.f32.mrf.mxu0
    %237 = vdwg.mxu0
    %v238 = vadd.f32 %v216, %v235
    %v239 = vxor.u32 %v238, 2147483648
    %v240 = vmul.f32 %v239, 1.442695
    %v241 = vpow.pop %v240
    %v242 = vadd.f32 %v241, 1.0
    %v243 = vrcp.pop %v242
    %v244 = vmul.f32 %v242, %v243
    %v245 = vsub.f32 1.0, %v244
    %v246 = vmul.f32 %v243, %v245
    %v247 = vadd.f32 %v243, %v246
    %vm248 = vweird.f32 %v242
    %vm249 = vweird.f32 %v243
    %vm250 = vmor %vm248, %vm249
    %v251 = vsel %vm250, %v243, %v247
    %v252 = vand.u32 2147483647, %v242
    %vm253 = vcmp.eq.f32.partialorder %v252, 8.507059e+37
    %v254 = vand.u32 %v242, 2147483648
    %v255 = vor.u32 1.1754944e-38, %v254
    %v256 = vsel %vm253, %v255, %v251
    %v257 = vmul.f32 1.0, %v256
    %v258 = vtanh.pop %v238
    %v259 = vmul.f32 %v257, %v214
    %261 = vrot.lane.b32.xlu0 %v258, 64
    %v262 = vpop.permute.xlu0 %261
    %v264 = vmul.f32 %v257, %v262
    %266 = vrot.lane.b32.xlu0 %v264, 32
    %v267 = vpop.permute.xlu0 %266
    %v269 = vadd.f32 %v259, %v267
    %v270 = vtanh.pop %v269
    %272 = vrot.lane.b32.xlu0 %v270, 64
    %v273 = vpop.permute.xlu0 %272
    %v275 = vmul.f32 %v257, %v273
    %v276 = vsub.f32 %v275, %v211
    %278 = vset.pattern.permute.xlu0 0
    %279 = vperm.xlu0 %278, %v217
    %v280 = vpop.permute.xlu0 %279
    %v282 = vmul.f32 %v280, %v276
    %v283 = vadd.f32 %v211, %v282
    %v284 = vsub.f32 %v269, %v214
    %v285 = vmul.f32 %v280, %v284
    %v286 = vadd.f32 %v214, %v285
    %s287 = scalar_lea.vmem [#allocation2], 48
    %v288 = vld [vmem:[%s287] sm:$0xff]
    %v289 = vld [vmem:[%s287 + $0x8] sm:$0xff]
    %v290 = vpack.c.bf16 %v283, %v283
    %292 = vrot.lane.b32.xlu0 %v290, 32
    %v293 = vpop.permute.xlu0 %292
    %v295 = vsel %vm79, %v293, 0
    %297 = vmatpush.bf16.msra.mxu0 0
    %298 = vmatpush.bf16.msra.mxu0 0
    %299 = vmatpush.bf16.msra.mxu0 0
    %300 = vmatpush.bf16.msra.mxu0 0
    %301 = vmatpush.bf16.msra.mxu0 0
    %302 = vmatpush.bf16.msra.mxu0 0
    %303 = vmatpush.bf16.msra.mxu0 %v76
    %304 = vmatpush.bf16.msra.mxu0 %v75
    %305 = vmatmul.bf16.gmra.mxu0 %v295
    %v306 = vpop.f32.mrf.mxu0
    %v307 = vadd.f32 0.0, %v306
    %v308 = vpop.f32.mrf.mxu0
    %309 = vdwg.mxu0
    %v310 = vadd.f32 %v288, %v307
    %v311 = vxor.u32 %v310, 2147483648
    %v312 = vmul.f32 %v311, 1.442695
    %v313 = vpow.pop %v312
    %v314 = vadd.f32 %v313, 1.0
    %v315 = vrcp.pop %v314
    %v316 = vmul.f32 %v314, %v315
    %v317 = vsub.f32 1.0, %v316
    %v318 = vmul.f32 %v315, %v317
    %v319 = vadd.f32 %v315, %v318
    %vm320 = vweird.f32 %v314
    %vm321 = vweird.f32 %v315
    %vm322 = vmor %vm320, %vm321
    %v323 = vsel %vm322, %v315, %v319
    %v324 = vand.u32 2147483647, %v314
    %vm325 = vcmp.eq.f32.partialorder %v324, 8.507059e+37
    %v326 = vand.u32 %v314, 2147483648
    %v327 = vor.u32 1.1754944e-38, %v326
    %v328 = vsel %vm325, %v327, %v323
    %v329 = vmul.f32 1.0, %v328
    %v330 = vtanh.pop %v310
    %v331 = vmul.f32 %v329, %v286
    %333 = vrot.lane.b32.xlu0 %v330, 64
    %v334 = vpop.permute.xlu0 %333
    %v336 = vmul.f32 %v329, %v334
    %338 = vrot.lane.b32.xlu0 %v336, 32
    %v339 = vpop.permute.xlu0 %338
    %v341 = vadd.f32 %v331, %v339
    %v342 = vtanh.pop %v341
    %344 = vrot.lane.b32.xlu0 %v342, 64
    %v345 = vpop.permute.xlu0 %344
    %v347 = vmul.f32 %v329, %v345
    %v348 = vsub.f32 %v347, %v283
    %350 = vset.pattern.permute.xlu0 0
    %351 = vperm.xlu0 %350, %v289
    %v352 = vpop.permute.xlu0 %351
    %v354 = vmul.f32 %v352, %v348
    %v355 = vadd.f32 %v283, %v354
    %v356 = vsub.f32 %v341, %v286
    %v357 = vmul.f32 %v352, %v356
    %v358 = vadd.f32 %v286, %v357
    %s359 = scalar_lea.vmem [#allocation2], 64
    %v360 = vld [vmem:[%s359] sm:$0xff]
    %v361 = vld [vmem:[%s359 + $0x8] sm:$0xff]
    %v362 = vpack.c.bf16 %v355, %v355
    %364 = vrot.lane.b32.xlu0 %v362, 32
    %v365 = vpop.permute.xlu0 %364
    %v367 = vsel %vm79, %v365, 0
    %369 = vmatpush.bf16.msra.mxu0 0
    %370 = vmatpush.bf16.msra.mxu0 0
    %371 = vmatpush.bf16.msra.mxu0 0
    %372 = vmatpush.bf16.msra.mxu0 0
    %373 = vmatpush.bf16.msra.mxu0 0
    %374 = vmatpush.bf16.msra.mxu0 0
    %375 = vmatpush.bf16.msra.mxu0 %v76
    %376 = vmatpush.bf16.msra.mxu0 %v75
    %377 = vmatmul.bf16.gmra.mxu0 %v367
    %v378 = vpop.f32.mrf.mxu0
    %v379 = vadd.f32 0.0, %v378
    %v380 = vpop.f32.mrf.mxu0
    %381 = vdwg.mxu0
    %v382 = vadd.f32 %v360, %v379
    %v383 = vxor.u32 %v382, 2147483648
    %v384 = vmul.f32 %v383, 1.442695
    %v385 = vpow.pop %v384
    %v386 = vadd.f32 %v385, 1.0
    %v387 = vrcp.pop %v386
    %v388 = vmul.f32 %v386, %v387
    %v389 = vsub.f32 1.0, %v388
    %v390 = vmul.f32 %v387, %v389
    %v391 = vadd.f32 %v387, %v390
    %vm392 = vweird.f32 %v386
    %vm393 = vweird.f32 %v387
    %vm394 = vmor %vm392, %vm393
    %v395 = vsel %vm394, %v387, %v391
    %v396 = vand.u32 2147483647, %v386
    %vm397 = vcmp.eq.f32.partialorder %v396, 8.507059e+37
    %v398 = vand.u32 %v386, 2147483648
    %v399 = vor.u32 1.1754944e-38, %v398
    %v400 = vsel %vm397, %v399, %v395
    %v401 = vmul.f32 1.0, %v400
    %v402 = vtanh.pop %v382
    %v403 = vmul.f32 %v401, %v358
    %405 = vrot.lane.b32.xlu0 %v402, 64
    %v406 = vpop.permute.xlu0 %405
    %v408 = vmul.f32 %v401, %v406
    %410 = vrot.lane.b32.xlu0 %v408, 32
    %v411 = vpop.permute.xlu0 %410
    %v413 = vadd.f32 %v403, %v411
    %v414 = vtanh.pop %v413
    %416 = vrot.lane.b32.xlu0 %v414, 64
    %v417 = vpop.permute.xlu0 %416
    %v419 = vmul.f32 %v401, %v417
    %v420 = vsub.f32 %v419, %v355
    %422 = vset.pattern.permute.xlu0 0
    %423 = vperm.xlu0 %422, %v361
    %v424 = vpop.permute.xlu0 %423
    %v426 = vmul.f32 %v424, %v420
    %v427 = vadd.f32 %v355, %v426
    %v428 = vsub.f32 %v413, %v358
    %v429 = vmul.f32 %v424, %v428
    %v430 = vadd.f32 %v358, %v429
    %s431 = scalar_lea.vmem [#allocation2], 80
    %v432 = vld [vmem:[%s431] sm:$0xff]
    %v433 = vld [vmem:[%s431 + $0x8] sm:$0xff]
    %v434 = vpack.c.bf16 %v427, %v427
    %436 = vrot.lane.b32.xlu0 %v434, 32
    %v437 = vpop.permute.xlu0 %436
    %v439 = vsel %vm79, %v437, 0
    %441 = vmatpush.bf16.msra.mxu0 0
    %442 = vmatpush.bf16.msra.mxu0 0
    %443 = vmatpush.bf16.msra.mxu0 0
    %444 = vmatpush.bf16.msra.mxu0 0
    %445 = vmatpush.bf16.msra.mxu0 0
    %446 = vmatpush.bf16.msra.mxu0 0
    %447 = vmatpush.bf16.msra.mxu0 %v76
    %448 = vmatpush.bf16.msra.mxu0 %v75
    %449 = vmatmul.bf16.gmra.mxu0 %v439
    %v450 = vpop.f32.mrf.mxu0
    %v451 = vadd.f32 0.0, %v450
    %v452 = vpop.f32.mrf.mxu0
    %453 = vdwg.mxu0
    %v454 = vadd.f32 %v432, %v451
    %v455 = vxor.u32 %v454, 2147483648
    %v456 = vmul.f32 %v455, 1.442695
    %v457 = vpow.pop %v456
    %v458 = vadd.f32 %v457, 1.0
    %v459 = vrcp.pop %v458
    %v460 = vmul.f32 %v458, %v459
    %v461 = vsub.f32 1.0, %v460
    %v462 = vmul.f32 %v459, %v461
    %v463 = vadd.f32 %v459, %v462
    %vm464 = vweird.f32 %v458
    %vm465 = vweird.f32 %v459
    %vm466 = vmor %vm464, %vm465
    %v467 = vsel %vm466, %v459, %v463
    %v468 = vand.u32 2147483647, %v458
    %vm469 = vcmp.eq.f32.partialorder %v468, 8.507059e+37
    %v470 = vand.u32 %v458, 2147483648
    %v471 = vor.u32 1.1754944e-38, %v470
    %v472 = vsel %vm469, %v471, %v467
    %v473 = vmul.f32 1.0, %v472
    %v474 = vtanh.pop %v454
    %v475 = vmul.f32 %v473, %v430
    %477 = vrot.lane.b32.xlu0 %v474, 64
    %v478 = vpop.permute.xlu0 %477
    %v480 = vmul.f32 %v473, %v478
    %482 = vrot.lane.b32.xlu0 %v480, 32
    %v483 = vpop.permute.xlu0 %482
    %v485 = vadd.f32 %v475, %v483
    %v486 = vtanh.pop %v485
    %488 = vrot.lane.b32.xlu0 %v486, 64
    %v489 = vpop.permute.xlu0 %488
    %v491 = vmul.f32 %v473, %v489
    %v492 = vsub.f32 %v491, %v427
    %494 = vset.pattern.permute.xlu0 0
    %495 = vperm.xlu0 %494, %v433
    %v496 = vpop.permute.xlu0 %495
    %v498 = vmul.f32 %v496, %v492
    %v499 = vadd.f32 %v427, %v498
    %v500 = vld [vmem:[#allocation5 + $0x20] sm:$0xff]
    %v501 = vld [vmem:[#allocation5 + $0x28] sm:$0xff]
    %v502 = vld [vmem:[#allocation5 + $0x30] sm:$0xff]
    %v503 = vld [vmem:[#allocation5 + $0x38] sm:$0xff]
    %v504 = vld [vmem:[#allocation5 + $0x40] sm:$0xff]
    %v505 = vld [vmem:[#allocation5 + $0x48] sm:$0xff]
    %v506 = vld [vmem:[#allocation5 + $0x50] sm:$0xff]
    %v507 = vld [vmem:[#allocation5 + $0x58] sm:$0xff]
    %v508 = vld [vmem:[#allocation5 + $0x60] sm:$0xff]
    %v509 = vld [vmem:[#allocation5 + $0x68] sm:$0xff]
    %v510 = vld [vmem:[#allocation5 + $0x70] sm:$0xff]
    %v511 = vld [vmem:[#allocation5 + $0x78] sm:$0xff]
    %v512 = vld [vmem:[#allocation5 + $0x80] sm:$0xff]
    %v513 = vld [vmem:[#allocation5 + $0x88] sm:$0xff]
    %v514 = vld [vmem:[#allocation5 + $0x90] sm:$0xff]
    %v515 = vld [vmem:[#allocation5 + $0x98] sm:$0xff]
    %v516 = vld [vmem:[#allocation7] sm:$0xf]
    %518 = vrot.lane.b32.xlu0 %v499, 32
    %v519 = vpop.permute.xlu0 %518
    %v521 = vsel %vm79, %v519, 0.0
    %s522 = scalar_lea.vmem [#allocation2], 96
    %v523 = vld [vmem:[%s522] sm:$0xff]
    %v524 = vld [vmem:[%s522 + $0x8] sm:$0xff]
    %v525 = vpack.c.bf16 %v521, %v521
    %v534 = vunpack.c.l.b16 %v500
    %v535 = vunpack.c.h.b16 %v500
    %v536 = vunpack.c.l.b16 %v501
    %v537 = vunpack.c.h.b16 %v501
    %v538 = vunpack.c.l.b16 %v502
    %v539 = vunpack.c.h.b16 %v502
    %v540 = vunpack.c.l.b16 %v503
    %v541 = vunpack.c.h.b16 %v503
    %v542 = vunpack.c.l.b16 %v504
    %v543 = vunpack.c.h.b16 %v504
    %v544 = vunpack.c.l.b16 %v505
    %v545 = vunpack.c.h.b16 %v505
    %v546 = vunpack.c.l.b16 %v506
    %v547 = vunpack.c.h.b16 %v506
    %v548 = vunpack.c.l.b16 %v507
    %v549 = vunpack.c.h.b16 %v507
    %v550 = vpack.c.b16 %v536, %v534
    %v551 = vpack.c.b16 %v537, %v535
    %v552 = vpack.c.b16 %v540, %v538
    %v553 = vpack.c.b16 %v541, %v539
    %v554 = vpack.c.b16 %v544, %v542
    %v555 = vpack.c.b16 %v545, %v543
    %v556 = vpack.c.b16 %v548, %v546
    %v557 = vpack.c.b16 %v549, %v547
    %vm566 = vcmask 523264
    %v568 = vsel %vm566, %v525, 0
    %570 = vmatpush.bf16.msra.mxu0 0
    %571 = vmatpush.bf16.msra.mxu0 0
    %572 = vmatpush.bf16.msra.mxu0 0
    %573 = vmatpush.bf16.msra.mxu0 0
    %574 = vmatpush.bf16.msra.mxu0 %v556
    %575 = vmatpush.bf16.msra.mxu0 %v554
    %576 = vmatpush.bf16.msra.mxu0 %v552
    %577 = vmatpush.bf16.msra.mxu0 %v550
    %578 = vmatmul.bf16.gmra.mxu0 %v568
    %v579 = vpop.f32.mrf.mxu0
    %v580 = vadd.f32 0.0, %v579
    %v581 = vpop.f32.mrf.mxu0
    %582 = vdwg.mxu0
    %583 = vmatpush.bf16.msra.mxu0 0
    %584 = vmatpush.bf16.msra.mxu0 0
    %585 = vmatpush.bf16.msra.mxu0 0
    %586 = vmatpush.bf16.msra.mxu0 0
    %587 = vmatpush.bf16.msra.mxu0 %v557
    %588 = vmatpush.bf16.msra.mxu0 %v555
    %589 = vmatpush.bf16.msra.mxu0 %v553
    %590 = vmatpush.bf16.msra.mxu0 %v551
    %591 = vmatmul.bf16.gmra.mxu0 %v568
    %v592 = vpop.f32.mrf.mxu0
    %v593 = vadd.f32 0.0, %v592
    %v594 = vpop.f32.mrf.mxu0
    %595 = vdwg.mxu0
    %v596 = vadd.f32 %v523, %v580
    %v597 = vadd.f32 %v524, %v593
    %v598 = vxor.u32 %v596, 2147483648
    %v599 = vxor.u32 %v597, 2147483648
    %v600 = vmul.f32 %v598, 1.442695
    %v601 = vpow.pop %v600
    %v602 = vmul.f32 %v599, 1.442695
    %v603 = vpow.pop %v602
    %v604 = vadd.f32 %v601, 1.0
    %v605 = vadd.f32 %v603, 1.0
    %v606 = vrcp.pop %v604
    %v607 = vmul.f32 %v604, %v606
    %v608 = vsub.f32 1.0, %v607
    %v609 = vmul.f32 %v606, %v608
    %v610 = vadd.f32 %v606, %v609
    %vm611 = vweird.f32 %v604
    %vm612 = vweird.f32 %v606
    %vm613 = vmor %vm611, %vm612
    %v614 = vsel %vm613, %v606, %v610
    %v615 = vand.u32 2147483647, %v604
    %vm616 = vcmp.eq.f32.partialorder %v615, 8.507059e+37
    %v617 = vand.u32 %v604, 2147483648
    %v618 = vor.u32 1.1754944e-38, %v617
    %v619 = vsel %vm616, %v618, %v614
    %v620 = vmul.f32 1.0, %v619
    %v621 = vrcp.pop %v605
    %v622 = vmul.f32 %v605, %v621
    %v623 = vsub.f32 1.0, %v622
    %v624 = vmul.f32 %v621, %v623
    %v625 = vadd.f32 %v621, %v624
    %vm626 = vweird.f32 %v605
    %vm627 = vweird.f32 %v621
    %vm628 = vmor %vm626, %vm627
    %v629 = vsel %vm628, %v621, %v625
    %v630 = vand.u32 2147483647, %v605
    %vm631 = vcmp.eq.f32.partialorder %v630, 8.507059e+37
    %v632 = vand.u32 %v605, 2147483648
    %v633 = vor.u32 1.1754944e-38, %v632
    %v634 = vsel %vm631, %v633, %v629
    %v635 = vmul.f32 1.0, %v634
    %v636 = vtanh.pop %v597
    %v637 = vmul.f32 %v620, 0.0
    %v638 = vmul.f32 %v620, %v636
    %640 = vrot.lane.b32.xlu0 %v638, 64
    %v641 = vpop.permute.xlu0 %640
    %v643 = vadd.f32 %v637, %v641
    %v644 = vtanh.pop %v643
    %v645 = vmul.f32 %v635, %v644
    %v646 = vpack.c.bf16 %v645, %v645
    %648 = vrot.lane.b32.xlu0 %v646, 64
    %v649 = vpop.permute.xlu0 %648
    %v658 = vunpack.c.l.b16 %v508
    %v659 = vunpack.c.h.b16 %v508
    %v660 = vunpack.c.l.b16 %v509
    %v661 = vunpack.c.h.b16 %v509
    %v662 = vunpack.c.l.b16 %v510
    %v663 = vunpack.c.h.b16 %v510
    %v664 = vunpack.c.l.b16 %v511
    %v665 = vunpack.c.h.b16 %v511
    %v666 = vunpack.c.l.b16 %v512
    %v667 = vunpack.c.h.b16 %v512
    %v668 = vunpack.c.l.b16 %v513
    %v669 = vunpack.c.h.b16 %v513
    %v670 = vunpack.c.l.b16 %v514
    %v671 = vunpack.c.h.b16 %v514
    %v672 = vunpack.c.l.b16 %v515
    %v673 = vunpack.c.h.b16 %v515
    %v674 = vpack.c.b16 %v660, %v658
    %v675 = vpack.c.b16 %v661, %v659
    %v676 = vpack.c.b16 %v664, %v662
    %v677 = vpack.c.b16 %v665, %v663
    %v678 = vpack.c.b16 %v668, %v666
    %v679 = vpack.c.b16 %v669, %v667
    %v680 = vpack.c.b16 %v672, %v670
    %v681 = vpack.c.b16 %v673, %v671
    %v691 = vsel %vm566, %v649, 0
    %693 = vmatpush.bf16.msra.mxu0 0
    %694 = vmatpush.bf16.msra.mxu0 0
    %695 = vmatpush.bf16.msra.mxu0 0
    %696 = vmatpush.bf16.msra.mxu0 0
    %697 = vmatpush.bf16.msra.mxu0 %v680
    %698 = vmatpush.bf16.msra.mxu0 %v678
    %699 = vmatpush.bf16.msra.mxu0 %v676
    %700 = vmatpush.bf16.msra.mxu0 %v674
    %701 = vmatmul.bf16.gmra.mxu0 %v691
    %v702 = vpop.f32.mrf.mxu0
    %v703 = vadd.f32 0.0, %v702
    %v704 = vpop.f32.mrf.mxu0
    %705 = vdwg.mxu0
    %706 = vmatpush.bf16.msra.mxu0 0
    %707 = vmatpush.bf16.msra.mxu0 0
    %708 = vmatpush.bf16.msra.mxu0 0
    %709 = vmatpush.bf16.msra.mxu0 0
    %710 = vmatpush.bf16.msra.mxu0 %v681
    %711 = vmatpush.bf16.msra.mxu0 %v679
    %712 = vmatpush.bf16.msra.mxu0 %v677
    %713 = vmatpush.bf16.msra.mxu0 %v675
    %714 = vmatmul.bf16.gmra.mxu0 %v691
    %v715 = vpop.f32.mrf.mxu0
    %v716 = vadd.f32 0.0, %v715
    %v717 = vpop.f32.mrf.mxu0
    %718 = vdwg.mxu0
    %v720 = vperm.slane %v516, 0
    %v721 = vperm.slane %v516, 2
    %v724 = vperm.slane %v720, 0
    %v725 = vperm.slane %v721, 0
    %v726 = vadd.f32 %v724, %v703
    %v727 = vadd.f32 %v725, %v716
    %v728 = vxor.u32 %v726, 2147483648
    %v729 = vxor.u32 %v727, 2147483648
    %v730 = vmul.f32 %v728, 1.442695
    %v731 = vpow.pop %v730
    %v732 = vmul.f32 %v729, 1.442695
    %v733 = vpow.pop %v732
    %v734 = vadd.f32 %v731, 1.0
    %v735 = vadd.f32 %v733, 1.0
    %v736 = vrcp.pop %v734
    %v737 = vmul.f32 %v734, %v736
    %v738 = vsub.f32 1.0, %v737
    %v739 = vmul.f32 %v736, %v738
    %v740 = vadd.f32 %v736, %v739
    %vm741 = vweird.f32 %v734
    %vm742 = vweird.f32 %v736
    %vm743 = vmor %vm741, %vm742
    %v744 = vsel %vm743, %v736, %v740
    %v745 = vand.u32 2147483647, %v734
    %vm746 = vcmp.eq.f32.partialorder %v745, 8.507059e+37
    %v747 = vand.u32 %v734, 2147483648
    %v748 = vor.u32 1.1754944e-38, %v747
    %v749 = vsel %vm746, %v748, %v744
    %v750 = vmul.f32 1.0, %v749
    %v751 = vrcp.pop %v735
    %v752 = vmul.f32 %v735, %v751
    %v753 = vsub.f32 1.0, %v752
    %v754 = vmul.f32 %v751, %v753
    %v755 = vadd.f32 %v751, %v754
    %vm756 = vweird.f32 %v735
    %vm757 = vweird.f32 %v751
    %vm758 = vmor %vm756, %vm757
    %v759 = vsel %vm758, %v751, %v755
    %v760 = vand.u32 2147483647, %v735
    %vm761 = vcmp.eq.f32.partialorder %v760, 8.507059e+37
    %v762 = vand.u32 %v735, 2147483648
    %v763 = vor.u32 1.1754944e-38, %v762
    %v764 = vsel %vm761, %v763, %v759
    %v765 = vmul.f32 1.0, %v764
    %v766 = vtanh.pop %v727
    %v767 = vmul.f32 %v750, %v643
    %v768 = vmul.f32 %v750, %v766
    %770 = vrot.lane.b32.xlu0 %v768, 64
    %v771 = vpop.permute.xlu0 %770
    %v773 = vadd.f32 %v767, %v771
    %v774 = vtanh.pop %v773
    %v775 = vmul.f32 %v765, %v774
    %v776 = vpack.c.bf16 %v775, %v775
    %778 = vrot.lane.b32.xlu0 %v776, 64
    %v779 = vpop.permute.xlu0 %778
    %v781 = vsel %vm566, %v779, 0
    %783 = vmatpush.bf16.msra.mxu0 0
    %784 = vmatpush.bf16.msra.mxu0 0
    %785 = vmatpush.bf16.msra.mxu0 0
    %786 = vmatpush.bf16.msra.mxu0 0
    %787 = vmatpush.bf16.msra.mxu0 %v680
    %788 = vmatpush.bf16.msra.mxu0 %v678
    %789 = vmatpush.bf16.msra.mxu0 %v676
    %790 = vmatpush.bf16.msra.mxu0 %v674
    %791 = vmatmul.bf16.gmra.mxu0 %v781
    %v792 = vpop.f32.mrf.mxu0
    %v793 = vadd.f32 0.0, %v792
    %v794 = vpop.f32.mrf.mxu0
    %795 = vdwg.mxu0
    %796 = vmatpush.bf16.msra.mxu0 0
    %797 = vmatpush.bf16.msra.mxu0 0
    %798 = vmatpush.bf16.msra.mxu0 0
    %799 = vmatpush.bf16.msra.mxu0 0
    %800 = vmatpush.bf16.msra.mxu0 %v681
    %801 = vmatpush.bf16.msra.mxu0 %v679
    %802 = vmatpush.bf16.msra.mxu0 %v677
    %803 = vmatpush.bf16.msra.mxu0 %v675
    %804 = vmatmul.bf16.gmra.mxu0 %v781
    %v805 = vpop.f32.mrf.mxu0
    %v806 = vadd.f32 0.0, %v805
    %v807 = vpop.f32.mrf.mxu0
    %808 = vdwg.mxu0
    %v809 = vadd.f32 %v724, %v793
    %v810 = vadd.f32 %v725, %v806
    %v811 = vxor.u32 %v809, 2147483648
    %v812 = vxor.u32 %v810, 2147483648
    %v813 = vmul.f32 %v811, 1.442695
    %v814 = vpow.pop %v813
    %v815 = vmul.f32 %v812, 1.442695
    %v816 = vpow.pop %v815
    %v817 = vadd.f32 %v814, 1.0
    %v818 = vadd.f32 %v816, 1.0
    %v819 = vrcp.pop %v817
    %v820 = vmul.f32 %v817, %v819
    %v821 = vsub.f32 1.0, %v820
    %v822 = vmul.f32 %v819, %v821
    %v823 = vadd.f32 %v819, %v822
    %vm824 = vweird.f32 %v817
    %vm825 = vweird.f32 %v819
    %vm826 = vmor %vm824, %vm825
    %v827 = vsel %vm826, %v819, %v823
    %v828 = vand.u32 2147483647, %v817
    %vm829 = vcmp.eq.f32.partialorder %v828, 8.507059e+37
    %v830 = vand.u32 %v817, 2147483648
    %v831 = vor.u32 1.1754944e-38, %v830
    %v832 = vsel %vm829, %v831, %v827
    %v833 = vmul.f32 1.0, %v832
    %v834 = vrcp.pop %v818
    %v835 = vmul.f32 %v818, %v834
    %v836 = vsub.f32 1.0, %v835
    %v837 = vmul.f32 %v834, %v836
    %v838 = vadd.f32 %v834, %v837
    %vm839 = vweird.f32 %v818
    %vm840 = vweird.f32 %v834
    %vm841 = vmor %vm839, %vm840
    %v842 = vsel %vm841, %v834, %v838
    %v843 = vand.u32 2147483647, %v818
    %vm844 = vcmp.eq.f32.partialorder %v843, 8.507059e+37
    %v845 = vand.u32 %v818, 2147483648
    %v846 = vor.u32 1.1754944e-38, %v845
    %v847 = vsel %vm844, %v846, %v842
    %v848 = vmul.f32 1.0, %v847
    %v849 = vtanh.pop %v810
    %v850 = vmul.f32 %v833, %v773
    %v851 = vmul.f32 %v833, %v849
    %853 = vrot.lane.b32.xlu0 %v851, 64
    %v854 = vpop.permute.xlu0 %853
    %v856 = vadd.f32 %v850, %v854
    %v857 = vtanh.pop %v856
    %v858 = vmul.f32 %v848, %v857
    %v859 = vpack.c.bf16 %v858, %v858
    %861 = vrot.lane.b32.xlu0 %v859, 64
    %v862 = vpop.permute.xlu0 %861
    %v864 = vsel %vm566, %v862, 0
    %866 = vmatpush.bf16.msra.mxu0 0
    %867 = vmatpush.bf16.msra.mxu0 0
    %868 = vmatpush.bf16.msra.mxu0 0
    %869 = vmatpush.bf16.msra.mxu0 0
    %870 = vmatpush.bf16.msra.mxu0 %v680
    %871 = vmatpush.bf16.msra.mxu0 %v678
    %872 = vmatpush.bf16.msra.mxu0 %v676
    %873 = vmatpush.bf16.msra.mxu0 %v674
    %874 = vmatmul.bf16.gmra.mxu0 %v864
    %v875 = vpop.f32.mrf.mxu0
    %v876 = vadd.f32 0.0, %v875
    %v877 = vpop.f32.mrf.mxu0
    %878 = vdwg.mxu0
    %879 = vmatpush.bf16.msra.mxu0 0
    %880 = vmatpush.bf16.msra.mxu0 0
    %881 = vmatpush.bf16.msra.mxu0 0
    %882 = vmatpush.bf16.msra.mxu0 0
    %883 = vmatpush.bf16.msra.mxu0 %v681
    %884 = vmatpush.bf16.msra.mxu0 %v679
    %885 = vmatpush.bf16.msra.mxu0 %v677
    %886 = vmatpush.bf16.msra.mxu0 %v675
    %887 = vmatmul.bf16.gmra.mxu0 %v864
    %v888 = vpop.f32.mrf.mxu0
    %v889 = vadd.f32 0.0, %v888
    %v890 = vpop.f32.mrf.mxu0
    %891 = vdwg.mxu0
    %v892 = vadd.f32 %v724, %v876
    %v893 = vadd.f32 %v725, %v889
    %v894 = vxor.u32 %v892, 2147483648
    %v895 = vxor.u32 %v893, 2147483648
    %v896 = vmul.f32 %v894, 1.442695
    %v897 = vpow.pop %v896
    %v898 = vmul.f32 %v895, 1.442695
    %v899 = vpow.pop %v898
    %v900 = vadd.f32 %v897, 1.0
    %v901 = vadd.f32 %v899, 1.0
    %v902 = vrcp.pop %v900
    %v903 = vmul.f32 %v900, %v902
    %v904 = vsub.f32 1.0, %v903
    %v905 = vmul.f32 %v902, %v904
    %v906 = vadd.f32 %v902, %v905
    %vm907 = vweird.f32 %v900
    %vm908 = vweird.f32 %v902
    %vm909 = vmor %vm907, %vm908
    %v910 = vsel %vm909, %v902, %v906
    %v911 = vand.u32 2147483647, %v900
    %vm912 = vcmp.eq.f32.partialorder %v911, 8.507059e+37
    %v913 = vand.u32 %v900, 2147483648
    %v914 = vor.u32 1.1754944e-38, %v913
    %v915 = vsel %vm912, %v914, %v910
    %v916 = vmul.f32 1.0, %v915
    %v917 = vrcp.pop %v901
    %v918 = vmul.f32 %v901, %v917
    %v919 = vsub.f32 1.0, %v918
    %v920 = vmul.f32 %v917, %v919
    %v921 = vadd.f32 %v917, %v920
    %vm922 = vweird.f32 %v901
    %vm923 = vweird.f32 %v917
    %vm924 = vmor %vm922, %vm923
    %v925 = vsel %vm924, %v917, %v921
    %v926 = vand.u32 2147483647, %v901
    %vm927 = vcmp.eq.f32.partialorder %v926, 8.507059e+37
    %v928 = vand.u32 %v901, 2147483648
    %v929 = vor.u32 1.1754944e-38, %v928
    %v930 = vsel %vm927, %v929, %v925
    %v931 = vmul.f32 1.0, %v930
    %v932 = vtanh.pop %v893
    %v933 = vmul.f32 %v916, %v856
    %v934 = vmul.f32 %v916, %v932
    %936 = vrot.lane.b32.xlu0 %v934, 64
    %v937 = vpop.permute.xlu0 %936
    %v939 = vadd.f32 %v933, %v937
    %v940 = vtanh.pop %v939
    %v941 = vmul.f32 %v931, %v940
    %v942 = vpack.c.bf16 %v941, %v941
    %944 = vrot.lane.b32.xlu0 %v942, 64
    %v945 = vpop.permute.xlu0 %944
    %v947 = vsel %vm566, %v945, 0
    %949 = vmatpush.bf16.msra.mxu0 0
    %950 = vmatpush.bf16.msra.mxu0 0
    %951 = vmatpush.bf16.msra.mxu0 0
    %952 = vmatpush.bf16.msra.mxu0 0
    %953 = vmatpush.bf16.msra.mxu0 %v680
    %954 = vmatpush.bf16.msra.mxu0 %v678
    %955 = vmatpush.bf16.msra.mxu0 %v676
    %956 = vmatpush.bf16.msra.mxu0 %v674
    %957 = vmatmul.bf16.gmra.mxu0 %v947
    %v958 = vpop.f32.mrf.mxu0
    %v959 = vadd.f32 0.0, %v958
    %v960 = vpop.f32.mrf.mxu0
    %961 = vdwg.mxu0
    %962 = vmatpush.bf16.msra.mxu0 0
    %963 = vmatpush.bf16.msra.mxu0 0
    %964 = vmatpush.bf16.msra.mxu0 0
    %965 = vmatpush.bf16.msra.mxu0 0
    %966 = vmatpush.bf16.msra.mxu0 %v681
    %967 = vmatpush.bf16.msra.mxu0 %v679
    %968 = vmatpush.bf16.msra.mxu0 %v677
    %969 = vmatpush.bf16.msra.mxu0 %v675
    %970 = vmatmul.bf16.gmra.mxu0 %v947
    %v971 = vpop.f32.mrf.mxu0
    %v972 = vadd.f32 0.0, %v971
    %v973 = vpop.f32.mrf.mxu0
    %974 = vdwg.mxu0
    %v975 = vadd.f32 %v724, %v959
    %v976 = vadd.f32 %v725, %v972
    %v977 = vxor.u32 %v975, 2147483648
    %v978 = vxor.u32 %v976, 2147483648
    %v979 = vmul.f32 %v977, 1.442695
    %v980 = vpow.pop %v979
    %v981 = vmul.f32 %v978, 1.442695
    %v982 = vpow.pop %v981
    %v983 = vadd.f32 %v980, 1.0
    %v984 = vadd.f32 %v982, 1.0
    %v985 = vrcp.pop %v983
    %v986 = vmul.f32 %v983, %v985
    %v987 = vsub.f32 1.0, %v986
    %v988 = vmul.f32 %v985, %v987
    %v989 = vadd.f32 %v985, %v988
    %vm990 = vweird.f32 %v983
    %vm991 = vweird.f32 %v985
    %vm992 = vmor %vm990, %vm991
    %v993 = vsel %vm992, %v985, %v989
    %v994 = vand.u32 2147483647, %v983
    %vm995 = vcmp.eq.f32.partialorder %v994, 8.507059e+37
    %v996 = vand.u32 %v983, 2147483648
    %v997 = vor.u32 1.1754944e-38, %v996
    %v998 = vsel %vm995, %v997, %v993
    %v999 = vmul.f32 1.0, %v998
    %v1000 = vrcp.pop %v984
    %v1001 = vmul.f32 %v984, %v1000
    %v1002 = vsub.f32 1.0, %v1001
    %v1003 = vmul.f32 %v1000, %v1002
    %v1004 = vadd.f32 %v1000, %v1003
    %vm1005 = vweird.f32 %v984
    %vm1006 = vweird.f32 %v1000
    %vm1007 = vmor %vm1005, %vm1006
    %v1008 = vsel %vm1007, %v1000, %v1004
    %v1009 = vand.u32 2147483647, %v984
    %vm1010 = vcmp.eq.f32.partialorder %v1009, 8.507059e+37
    %v1011 = vand.u32 %v984, 2147483648
    %v1012 = vor.u32 1.1754944e-38, %v1011
    %v1013 = vsel %vm1010, %v1012, %v1008
    %v1014 = vmul.f32 1.0, %v1013
    %v1015 = vtanh.pop %v976
    %v1016 = vmul.f32 %v999, %v939
    %v1017 = vmul.f32 %v999, %v1015
    %1019 = vrot.lane.b32.xlu0 %v1017, 64
    %v1020 = vpop.permute.xlu0 %1019
    %v1022 = vadd.f32 %v1016, %v1020
    %v1023 = vtanh.pop %v1022
    %v1024 = vmul.f32 %v1014, %v1023
    %v1025 = vld [vmem:[#allocation5 + $0xa0] sm:$0xff]
    %v1026 = vld [vmem:[#allocation5 + $0xa8] sm:$0xff]
    %v1027 = vld [vmem:[#allocation5 + $0xb0] sm:$0xff]
    %v1028 = vld [vmem:[#allocation5 + $0xb8] sm:$0xff]
    %v1029 = vld [vmem:[#allocation5 + $0xc0] sm:$0xff]
    %v1030 = vld [vmem:[#allocation5 + $0xc8] sm:$0xff]
    %v1031 = vld [vmem:[#allocation5 + $0xd0] sm:$0xff]
    %v1032 = vld [vmem:[#allocation5 + $0xd8] sm:$0xff]
    %v1033 = vpack.c.bf16 %v775, %v645
    %v1034 = vpack.c.bf16 %v941, %v858
    %v1035 = vpack.c.bf16 %v1024, %v1024
    %v1036 = vperm.slane %v516, 1
    %1040 = vrot.lane.b32.xlu0 %v1033, 64
    %v1041 = vpop.permute.xlu0 %1040
    %1042 = vrot.lane.b32.xlu0 %v1034, 64
    %v1043 = vpop.permute.xlu0 %1042
    %1044 = vrot.lane.b32.xlu0 %v1035, 64
    %v1045 = vpop.permute.xlu0 %1044
    %v1054 = vunpack.c.l.b16 %v1025
    %v1055 = vunpack.c.l.b16 %v1026
    %v1056 = vunpack.c.l.b16 %v1027
    %v1057 = vunpack.c.l.b16 %v1028
    %v1058 = vunpack.c.l.b16 %v1029
    %v1059 = vunpack.c.l.b16 %v1030
    %v1060 = vunpack.c.l.b16 %v1031
    %v1061 = vunpack.c.l.b16 %v1032
    %v1062 = vpack.c.b16 %v1055, %v1054
    %v1063 = vpack.c.b16 %v1057, %v1056
    %v1064 = vpack.c.b16 %v1059, %v1058
    %v1065 = vpack.c.b16 %v1061, %v1060
    %v1071 = vsel %vm566, %v1041, 0
    %v1074 = vsel %vm566, %v1043, 0
    %v1077 = vsel %vm566, %v1045, 0
    %1079 = vmatpush.bf16.msra.mxu0 0
    %1080 = vmatpush.bf16.msra.mxu0 0
    %1081 = vmatpush.bf16.msra.mxu0 0
    %1082 = vmatpush.bf16.msra.mxu0 0
    %1083 = vmatpush.bf16.msra.mxu0 %v1065
    %1084 = vmatpush.bf16.msra.mxu0 %v1064
    %1085 = vmatpush.bf16.msra.mxu0 %v1063
    %1086 = vmatpush.bf16.msra.mxu0 %v1062
    %1087 = vmatmul.bf16.gmra.mxu0 %v1071
    %v1088 = vpop.f32.mrf.mxu0
    %v1089 = vadd.f32 %v1036, %v1088
    %v1090 = vpop.f32.mrf.mxu0
    %v1091 = vadd.f32 %v1036, %v1090
    %1092 = vmatmul.bf16.gmra.mxu0 %v1074
    %v1093 = vpop.f32.mrf.mxu0
    %v1094 = vadd.f32 %v1036, %v1093
    %v1095 = vpop.f32.mrf.mxu0
    %v1096 = vadd.f32 %v1036, %v1095
    %1097 = vmatmul.bf16.gmra.mxu0 %v1077
    %v1098 = vpop.f32.mrf.mxu0
    %v1099 = vadd.f32 %v1036, %v1098
    %v1100 = vpop.f32.mrf.mxu0
    %1101 = vdwg.mxu0
    %s1102 = scalar_lea.vmem [#allocation2], 112
    %v1103 = vld [vmem:[%s1102] sm:$0xff]
    %v1104 = vadd.f32 %v1103, %v1089
    %v1105 = vadd.f32 %v1104, %v1091
    %v1106 = vadd.f32 %v1105, %v1094
    %v1107 = vadd.f32 %v1106, %v1096
    %v1108 = vadd.f32 %v1107, %v1099
    %1110 = vrot.lane.b32.xlu0 %v1105, 2
    %v1111 = vpop.permute.xlu0 %1110
    %1114 = vrot.lane.b32.xlu0 %v1106, 4
    %v1115 = vpop.permute.xlu0 %1114
    %1118 = vrot.lane.b32.xlu0 %v1107, 6
    %v1119 = vpop.permute.xlu0 %1118
    %1122 = vrot.lane.b32.xlu0 %v1108, 8
    %v1123 = vpop.permute.xlu0 %1122
    %vm1125 = vcmask 15360
    %v1126 = vsel %vm1125, %v1104, %v1111
    %vm1127 = vcmask 31744
    %v1128 = vsel %vm1127, %v1126, %v1115
    %vm1129 = vcmask 48128
    %v1130 = vsel %vm1129, %v1128, %v1119
    %vm1131 = vcmask 64512
    %v1132 = vsel %vm1131, %v1130, %v1123
    %vm1133 = vcmask 80896
    %1134 = vst.msk [vmem:[#allocation8] sm:$0xff] %vm1133, %v1132
    // Predicated region
    $region26: #{tpu_custom_call.1} parent=1 // pred_check
      _
    $region27: #{tpu_custom_call.1} parent=1 // pred_check_branch
      %1136 = sbr.rel (0) target = $region29
    $region28: #{tpu_custom_call.1} parent=1 // pred_region
      %1138 = vsyncadd [#allocation4], 0
      %s1140 = sshll.u32 [#allocation8], 4
      %s1141 = int_to_ptr.vmem [resolvable:$true] %s1140
      %s1142 = sshll.u32 %s3, 4
      %s1143 = int_to_ptr.hbm [resolvable:$true] %s1142
      %1145 = dma.vmem_to_hbm [thread:$0]  %s1141, 128, %s1143, [#allocation4]
    $region29: #{tpu_custom_call.1} parent=1 // pred_fallthru
      _
    // Predicated region
    $region30: #{tpu_custom_call.1} parent=1 // pred_check
      _
    $region31: #{tpu_custom_call.1} parent=1 // pred_check_branch
      %1147 = sbr.rel (0) target = $region33
    $region32: #{tpu_custom_call.1} parent=1 // pred_region
      %1149 = dma.done [#allocation4], 128
    $region33: #{tpu_custom_call.1} parent=1 // pred_fallthru
      _
    %1150 = vsyncpa [#allocation3], 1
    %1151 = vsyncpa [#allocation6], 1
    %1152 = vsyncpa [#allocation4], 1

</llo_original>
